<compile_context>
chip_gen: v7x
topology: tpu7x:2x2x1
jax: 0.10.0
libtpu: 0.0.40
codegen_flags: <defaults>
</compile_context>

<pallas_src>
import numpy as np
import jax
import jax.numpy as jnp
from jax.experimental import pallas as pl
from jax.experimental.pallas import tpu as pltpu

# ---- constants mirroring the module's config --------------------------------
NON_JOINTS_NUM = 2          # stand-in for cfg.TRAIN.non_joints_num
TEMPERATURE = 0.07          # SupConLoss() default (Joint2JointLoss.temperature=0.5 never reaches SupConLoss)
BASE_TEMPERATURE = 0.07
NEG = -1e30                 # finite "minus infinity": keeps 0 * NEG == 0 (no NaNs)


def _round_up(x, m):
    return ((x + m - 1) // m) * m


# ---- Pallas kernel -----------------------------------------------------------
def supcon_tiled_kernel(xr_ref, xc_ref, lab_r_ref, lab_c_ref, idx_r_ref, idx_c_ref,
                        val_r_ref, val_c_ref, out_ref,
                        m_ref, l_ref, ps_ref, pc_ref):
    j = pl.program_id(1)
    nj = pl.num_programs(1)

    @pl.when(j == 0)
    def _init():
        m_ref[...] = jnp.full_like(m_ref, NEG)
        l_ref[...] = jnp.zeros_like(l_ref)
        ps_ref[...] = jnp.zeros_like(ps_ref)
        pc_ref[...] = jnp.zeros_like(pc_ref)

    # S tile = X_rows @ X_cols^T / T   (bf16 inputs -> f32 accumulation on the MXU)
    s = jax.lax.dot_general(
        xr_ref[...], xc_ref[...], (((1,), (1,)), ((), ())),
        preferred_element_type=jnp.float32) * jnp.float32(1.0 / TEMPERATURE)  # [TM, TN]

    col_ok = val_c_ref[...] > jnp.float32(0.5)           # [1, TN] valid contrast columns
    not_self = idx_r_ref[...] != idx_c_ref[...]          # [TM, TN] self-pair exclusion
    allowed = not_self & col_ok                          # columns allowed in denominator
    pos = allowed & (lab_r_ref[...] == lab_c_ref[...])   # positive pairs

    # ---- online logsumexp over the allowed columns (running max + denom) ----
    s_m = jnp.where(allowed, s, jnp.float32(NEG))
    m_old = m_ref[...]
    m_new = jnp.maximum(m_old, jnp.max(s_m, axis=1, keepdims=True))   # [TM, 1]
    alpha = jnp.exp(m_old - m_new)
    p = jnp.exp(s_m - m_new)           # masked entries underflow to exactly 0
    l_ref[...] = alpha * l_ref[...] + jnp.sum(p, axis=1, keepdims=True)
    m_ref[...] = m_new

    # ---- streamed positive-pair statistics (log_prob eliminated algebraically) ----
    posf = pos.astype(jnp.float32)
    ps_ref[...] += jnp.sum(posf * s, axis=1, keepdims=True)
    pc_ref[...] += jnp.sum(posf, axis=1, keepdims=True)

    @pl.when(j == nj - 1)
    def _finalize():
        log_denom = jnp.log(jnp.maximum(l_ref[...], jnp.float32(1e-30))) + m_ref[...]
        pc = pc_ref[...]
        mean_lp = (ps_ref[...] - pc * log_denom) / jnp.maximum(pc, jnp.float32(1.0))
        per_row = jnp.float32(-(TEMPERATURE / BASE_TEMPERATURE)) * mean_lp
        out_ref[...] = per_row * val_r_ref[...]          # only valid anchors contribute


# ---- wrapper: Joint2JointLoss.forward ----------------------------------------
def joint2joint_loss(output, target):
    """output: [B, J_total, V, D] float; target: [B, J_total] int (>= 0)."""
    output = output[:, :-NON_JOINTS_NUM]                 # [B, J, V, D]
    target = target[:, :-NON_JOINTS_NUM]                 # [B, J]
    B, J, V, D = output.shape

    labels = jnp.tile(jnp.arange(J, dtype=jnp.int32)[None, :], (B, 1)).reshape(B * J)
    valid = (target.reshape(B * J) != 0).astype(jnp.float32)
    feats = output.reshape(B * J, V, D).astype(jnp.float32)

    # contrast_feature = cat(unbind(features, dim=1), dim=0) -> view-major [N, D]
    X = jnp.transpose(feats, (1, 0, 2)).reshape(V * B * J, D)
    lab_full = jnp.tile(labels, V)                       # [N]
    val_full = jnp.tile(valid, V)                        # [N]
    N = V * B * J

    # Adaptive (8,128)-aligned tile: large N -> bigger tiles to amortize the
    # ~0.35us/step grid overhead; small N -> 128 so the streaming path is real.
    if N > 2048:
        TILE = 512
    elif N > 256:
        TILE = 256
    else:
        TILE = 128
    N_pad = _round_up(N, TILE)
    Dp = _round_up(D, 128)

    # bf16 MXU inputs; zero padding is a no-op for X @ X^T, padded rows have val=0
    Xp = jnp.zeros((N_pad, Dp), jnp.bfloat16).at[:N, :D].set(X.astype(jnp.bfloat16))
    lab_p = jnp.full((N_pad,), -1, jnp.int32).at[:N].set(lab_full)
    val_p = jnp.zeros((N_pad,), jnp.float32).at[:N].set(val_full)
    idx_p = jnp.arange(N_pad, dtype=jnp.int32)

    grid = (N_pad // TILE, N_pad // TILE)

    per_row = pl.pallas_call(
        supcon_tiled_kernel,
        out_shape=jax.ShapeDtypeStruct((N_pad, 1), jnp.float32),
        grid=grid,
        in_specs=[
            pl.BlockSpec((TILE, Dp), lambda i, j: (i, 0)),   # X row block (resident over j)
            pl.BlockSpec((TILE, Dp), lambda i, j: (j, 0)),   # X col block (streamed)
            pl.BlockSpec((TILE, 1), lambda i, j: (i, 0)),    # labels (rows)
            pl.BlockSpec((1, TILE), lambda i, j: (0, j)),    # labels (cols)
            pl.BlockSpec((TILE, 1), lambda i, j: (i, 0)),    # global row indices
            pl.BlockSpec((1, TILE), lambda i, j: (0, j)),    # global col indices
            pl.BlockSpec((TILE, 1), lambda i, j: (i, 0)),    # validity (rows)
            pl.BlockSpec((1, TILE), lambda i, j: (0, j)),    # validity (cols)
        ],
        out_specs=pl.BlockSpec((TILE, 1), lambda i, j: (i, 0)),
        scratch_shapes=[
            pltpu.VMEM((TILE, 1), jnp.float32),   # running max m
            pltpu.VMEM((TILE, 1), jnp.float32),   # running denom l
            pltpu.VMEM((TILE, 1), jnp.float32),   # sum(pos * s)
            pltpu.VMEM((TILE, 1), jnp.float32),   # pos count
        ],
        compiler_params=pltpu.CompilerParams(
            dimension_semantics=("parallel", "arbitrary"),
            vmem_limit_bytes=32 * 1024 * 1024),
    )(Xp, Xp,
      lab_p.reshape(N_pad, 1), lab_p.reshape(1, N_pad),
      idx_p.reshape(N_pad, 1), idx_p.reshape(1, N_pad),
      val_p.reshape(N_pad, 1), val_p.reshape(1, N_pad))

    cnt = jnp.sum(val_full)                              # = n_views * num_valid_samples
    return jnp.sum(per_row) / jnp.maximum(cnt, jnp.float32(1.0))


# ---- pure numpy reference mirroring the PyTorch code exactly -----------------
def ref_joint2joint_loss(output, target):
    output = np.asarray(output, dtype=np.float32)[:, :-NON_JOINTS_NUM]
    target = np.asarray(target)[:, :-NON_JOINTS_NUM]
    B, J, V, D = output.shape
    labels = np.tile(np.arange(J), (B, 1)).reshape(-1)
    feats = output.reshape(B * J, V, D)
    tv = target.reshape(-1) != 0
    feats = feats[tv]
    labels = labels[tv]
    bsz = feats.shape[0]
    mask = (labels[:, None] == labels[None, :]).astype(np.float32)
    cf = np.concatenate([feats[:, v] for v in range(V)], axis=0)      # [V*bsz, D]
    adc = cf @ cf.T / TEMPERATURE
    logits = adc - adc.max(axis=1, keepdims=True)
    mask = np.tile(mask, (V, V))
    lm = np.ones_like(mask)
    np.fill_diagonal(lm, 0.0)
    mask = mask * lm
    exp_l = np.exp(logits) * lm
    log_prob = logits - np.log(exp_l.sum(1, keepdims=True))
    mlpp = (mask * log_prob).sum(1) / mask.sum(1)
    loss = -(TEMPERATURE / BASE_TEMPERATURE) * mlpp
    return loss.reshape(V, bsz).mean()


if __name__ == "__main__":
    key = jax.random.PRNGKey(0)
    k1, k2 = jax.random.split(key)

    # small shapes: batch=12, total joints=8 (6 usable + 2 non-joints), 2 views, 32-dim feats
    # N = 2*12*6 = 144 -> padded to 256 with TILE=128 -> grid (2,2), exercising the
    # streaming (multi-column-tile) logsumexp path.
    B, J_total, V, D = 12, 8, 2, 32
    output = jax.random.normal(k1, (B, J_total, V, D), dtype=jnp.float32)
    output = output / jnp.linalg.norm(output, axis=-1, keepdims=True)  # unit features
    target = (jax.random.uniform(k2, (B, J_total)) > 0.3).astype(jnp.int32)
    target = target.at[:, 0].set(1)   # guarantee some valid joints (target >= 0 always)

    loss = jax.jit(joint2joint_loss)(output, target)
    jax.block_until_ready(loss)

    ref = ref_joint2joint_loss(np.array(output), np.array(target))
    # bf16 MXU inputs -> slightly looser tolerance than pure f32
    assert abs(float(loss) - float(ref)) <= 2e-2 + 2e-2 * abs(float(ref)), (float(loss), float(ref))
    print("KERNEL_OK")
</pallas_src>

<mosaic_0001>
module attributes {stable_mosaic.version = 11 : i64} {
  func.func @supcon_tiled_kernel(%arg0: i32, %arg1: i32, %arg2: memref<128x128xbf16, #tpu.memory_space<vmem>>, %arg3: memref<128x128xbf16, #tpu.memory_space<vmem>>, %arg4: memref<128x1xi32, #tpu.memory_space<vmem>>, %arg5: memref<1x128xi32, #tpu.memory_space<vmem>>, %arg6: memref<128x1xi32, #tpu.memory_space<vmem>>, %arg7: memref<1x128xi32, #tpu.memory_space<vmem>>, %arg8: memref<128x1xf32, #tpu.memory_space<vmem>>, %arg9: memref<1x128xf32, #tpu.memory_space<vmem>>, %arg10: memref<128x1xf32, #tpu.memory_space<vmem>>, %arg11: memref<128x1xf32, #tpu.memory_space<vmem>>, %arg12: memref<128x1xf32, #tpu.memory_space<vmem>>, %arg13: memref<128x1xf32, #tpu.memory_space<vmem>>, %arg14: memref<128x1xf32, #tpu.memory_space<vmem>>) attributes {dimension_semantics = [#tpu.dimension_semantics<parallel>, #tpu.dimension_semantics<arbitrary>], iteration_bounds = array<i64: 2, 2>, scalar_prefetch = 0 : i64, scratch_operands = 4 : i64, tpu.core_type = #tpu.core_type<tc>, window_params = [{transform_indices = @transform_0, window_bounds = array<i64: 128, 128>}, {transform_indices = @transform_1, window_bounds = array<i64: 128, 128>}, {transform_indices = @transform_2, window_bounds = array<i64: 128, 1>}, {transform_indices = @transform_3, window_bounds = array<i64: 1, 128>}, {transform_indices = @transform_4, window_bounds = array<i64: 128, 1>}, {transform_indices = @transform_5, window_bounds = array<i64: 1, 128>}, {transform_indices = @transform_6, window_bounds = array<i64: 128, 1>}, {transform_indices = @transform_7, window_bounds = array<i64: 1, 128>}, {transform_indices = @transform_8, window_bounds = array<i64: 128, 1>}]} {
    %c0_i32 = arith.constant 0 : i32
    %0 = arith.cmpi eq, %arg1, %c0_i32 : i32
    %1 = arith.extui %0 : i1 to i32
    %c0_i32_0 = arith.constant 0 : i32
    %2 = arith.cmpi ne, %1, %c0_i32_0 : i32
    scf.if %2 {
      %cst_38 = arith.constant -1.000000e+30 : f32
      %58 = vector.broadcast %cst_38 : f32 to vector<128x1xf32>
      %c0_39 = arith.constant 0 : index
      %c0_40 = arith.constant 0 : index
      %59 = vector.load %arg11[%c0_39, %c0_40] : memref<128x1xf32, #tpu.memory_space<vmem>>, vector<128x1xf32>
      tpu.vector_store %arg11[%c0_39, %c0_40], %58 {strides = array<i32>} : memref<128x1xf32, #tpu.memory_space<vmem>>, vector<128x1xf32>,
      %cst_41 = arith.constant 0.000000e+00 : f32
      %60 = vector.broadcast %cst_41 : f32 to vector<128x1xf32>
      %c0_42 = arith.constant 0 : index
      %c0_43 = arith.constant 0 : index
      %61 = vector.load %arg12[%c0_42, %c0_43] : memref<128x1xf32, #tpu.memory_space<vmem>>, vector<128x1xf32>
      tpu.vector_store %arg12[%c0_42, %c0_43], %60 {strides = array<i32>} : memref<128x1xf32, #tpu.memory_space<vmem>>, vector<128x1xf32>,
      %cst_44 = arith.constant 0.000000e+00 : f32
      %62 = vector.broadcast %cst_44 : f32 to vector<128x1xf32>
      %c0_45 = arith.constant 0 : index
      %c0_46 = arith.constant 0 : index
      %63 = vector.load %arg13[%c0_45, %c0_46] : memref<128x1xf32, #tpu.memory_space<vmem>>, vector<128x1xf32>
      tpu.vector_store %arg13[%c0_45, %c0_46], %62 {strides = array<i32>} : memref<128x1xf32, #tpu.memory_space<vmem>>, vector<128x1xf32>,
      %cst_47 = arith.constant 0.000000e+00 : f32
      %64 = vector.broadcast %cst_47 : f32 to vector<128x1xf32>
      %c0_48 = arith.constant 0 : index
      %c0_49 = arith.constant 0 : index
      %65 = vector.load %arg14[%c0_48, %c0_49] : memref<128x1xf32, #tpu.memory_space<vmem>>, vector<128x1xf32>
      tpu.vector_store %arg14[%c0_48, %c0_49], %64 {strides = array<i32>} : memref<128x1xf32, #tpu.memory_space<vmem>>, vector<128x1xf32>,
    } else {
    }
    %c0 = arith.constant 0 : index
    %c0_1 = arith.constant 0 : index
    %3 = vector.load %arg2[%c0, %c0_1] : memref<128x128xbf16, #tpu.memory_space<vmem>>, vector<128x128xbf16>
    %c0_2 = arith.constant 0 : index
    %c0_3 = arith.constant 0 : index
    %4 = vector.load %arg3[%c0_2, %c0_3] : memref<128x128xbf16, #tpu.memory_space<vmem>>, vector<128x128xbf16>
    %cst = arith.constant dense<0.000000e+00> : vector<128x128xf32>
    %5 = tpu.matmul %3, %4, %cst {dimension_numbers = #tpu.dot_dimension_numbers<[1], [1], [0], [0], [0, 0, 1, 0], [], []>} : vector<128x128xbf16>, vector<128x128xbf16>, vector<128x128xf32> -> vector<128x128xf32>
    %cst_4 = arith.constant 14.2857141 : f32
    %6 = vector.broadcast %cst_4 : f32 to vector<128x128xf32>
    %7 = arith.mulf %5, %6 : vector<128x128xf32>
    %c0_5 = arith.constant 0 : index
    %c0_6 = arith.constant 0 : index
    %8 = vector.load %arg9[%c0_5, %c0_6] : memref<1x128xf32, #tpu.memory_space<vmem>>, vector<1x128xf32>
    %cst_7 = arith.constant 5.000000e-01 : f32
    %9 = vector.broadcast %cst_7 : f32 to vector<1x128xf32>
    %10 = arith.cmpf ogt, %8, %9 : vector<1x128xf32>
    %c0_8 = arith.constant 0 : index
    %c0_9 = arith.constant 0 : index
    %11 = vector.load %arg6[%c0_8, %c0_9] : memref<128x1xi32, #tpu.memory_space<vmem>>, vector<128x1xi32>
    %c0_10 = arith.constant 0 : index
    %c0_11 = arith.constant 0 : index
    %12 = vector.load %arg7[%c0_10, %c0_11] : memref<1x128xi32, #tpu.memory_space<vmem>>, vector<1x128xi32>
    %13 = vector.broadcast %11 : vector<128x1xi32> to vector<128x128xi32>
    %14 = vector.broadcast %12 : vector<1x128xi32> to vector<128x128xi32>
    %15 = arith.cmpi ne, %13, %14 : vector<128x128xi32>
    %16 = vector.broadcast %10 : vector<1x128xi1> to vector<128x128xi1>
    %17 = arith.andi %15, %16 : vector<128x128xi1>
    %c0_12 = arith.constant 0 : index
    %c0_13 = arith.constant 0 : index
    %18 = vector.load %arg4[%c0_12, %c0_13] : memref<128x1xi32, #tpu.memory_space<vmem>>, vector<128x1xi32>
    %c0_14 = arith.constant 0 : index
    %c0_15 = arith.constant 0 : index
    %19 = vector.load %arg5[%c0_14, %c0_15] : memref<1x128xi32, #tpu.memory_space<vmem>>, vector<1x128xi32>
    %20 = vector.broadcast %18 : vector<128x1xi32> to vector<128x128xi32>
    %21 = vector.broadcast %19 : vector<1x128xi32> to vector<128x128xi32>
    %22 = arith.cmpi eq, %20, %21 : vector<128x128xi32>
    %23 = arith.andi %17, %22 : vector<128x128xi1>
    %cst_16 = arith.constant -1.000000e+30 : f32
    %24 = vector.broadcast %cst_16 : f32 to vector<128x128xf32>
    %25 = arith.select %17, %7, %24 : vector<128x128xi1>, vector<128x128xf32>
    %c0_17 = arith.constant 0 : index
    %c0_18 = arith.constant 0 : index
    %26 = vector.load %arg11[%c0_17, %c0_18] : memref<128x1xf32, #tpu.memory_space<vmem>>, vector<128x1xf32>
    %cst_19 = arith.constant dense<0xFF800000> : vector<128xf32>
    %27 = vector.multi_reduction <maximumf>, %25, %cst_19 [1] : vector<128x128xf32> to vector<128xf32>
    %28 = vector.shape_cast %27 : vector<128xf32> to vector<128x1xf32>
    %29 = arith.maximumf %26, %28 : vector<128x1xf32>
    %30 = arith.subf %26, %29 : vector<128x1xf32>
    %31 = math.exp %30 : vector<128x1xf32>
    %32 = vector.broadcast %29 : vector<128x1xf32> to vector<128x128xf32>
    %33 = arith.subf %25, %32 : vector<128x128xf32>
    %34 = math.exp %33 : vector<128x128xf32>
    %c0_20 = arith.constant 0 : index
    %c0_21 = arith.constant 0 : index
    %35 = vector.load %arg12[%c0_20, %c0_21] : memref<128x1xf32, #tpu.memory_space<vmem>>, vector<128x1xf32>
    %36 = arith.mulf %31, %35 : vector<128x1xf32>
    %cst_22 = arith.constant dense<0.000000e+00> : vector<128xf32>
    %37 = vector.multi_reduction <add>, %34, %cst_22 [1] : vector<128x128xf32> to vector<128xf32>
    %38 = vector.shape_cast %37 : vector<128xf32> to vector<128x1xf32>
    %39 = arith.addf %36, %38 : vector<128x1xf32>
    %c0_23 = arith.constant 0 : index
    %c0_24 = arith.constant 0 : index
    %40 = vector.load %arg12[%c0_23, %c0_24] : memref<128x1xf32, #tpu.memory_space<vmem>>, vector<128x1xf32>
    tpu.vector_store %arg12[%c0_23, %c0_24], %39 {strides = array<i32>} : memref<128x1xf32, #tpu.memory_space<vmem>>, vector<128x1xf32>,
    %c0_25 = arith.constant 0 : index
    %c0_26 = arith.constant 0 : index
    %41 = vector.load %arg11[%c0_25, %c0_26] : memref<128x1xf32, #tpu.memory_space<vmem>>, vector<128x1xf32>
    tpu.vector_store %arg11[%c0_25, %c0_26], %29 {strides = array<i32>} : memref<128x1xf32, #tpu.memory_space<vmem>>, vector<128x1xf32>,
    %42 = arith.extui %23 : vector<128x128xi1> to vector<128x128xi32>
    %43 = arith.sitofp %42 : vector<128x128xi32> to vector<128x128xf32>
    %c0_27 = arith.constant 0 : index
    %c0_28 = arith.constant 0 : index
    %44 = vector.load %arg13[%c0_27, %c0_28] : memref<128x1xf32, #tpu.memory_space<vmem>>, vector<128x1xf32>
    %45 = arith.mulf %43, %7 : vector<128x128xf32>
    %cst_29 = arith.constant dense<0.000000e+00> : vector<128xf32>
    %46 = vector.multi_reduction <add>, %45, %cst_29 [1] : vector<128x128xf32> to vector<128xf32>
    %47 = vector.shape_cast %46 : vector<128xf32> to vector<128x1xf32>
    %48 = arith.addf %44, %47 : vector<128x1xf32>
    %c0_30 = arith.constant 0 : index
    %c0_31 = arith.constant 0 : index
    %49 = vector.load %arg13[%c0_30, %c0_31] : memref<128x1xf32, #tpu.memory_space<vmem>>, vector<128x1xf32>
    tpu.vector_store %arg13[%c0_30, %c0_31], %48 {strides = array<i32>} : memref<128x1xf32, #tpu.memory_space<vmem>>, vector<128x1xf32>,
    %c0_32 = arith.constant 0 : index
    %c0_33 = arith.constant 0 : index
    %50 = vector.load %arg14[%c0_32, %c0_33] : memref<128x1xf32, #tpu.memory_space<vmem>>, vector<128x1xf32>
    %cst_34 = arith.constant dense<0.000000e+00> : vector<128xf32>
    %51 = vector.multi_reduction <add>, %43, %cst_34 [1] : vector<128x128xf32> to vector<128xf32>
    %52 = vector.shape_cast %51 : vector<128xf32> to vector<128x1xf32>
    %53 = arith.addf %50, %52 : vector<128x1xf32>
    %c0_35 = arith.constant 0 : index
    %c0_36 = arith.constant 0 : index
    %54 = vector.load %arg14[%c0_35, %c0_36] : memref<128x1xf32, #tpu.memory_space<vmem>>, vector<128x1xf32>
    tpu.vector_store %arg14[%c0_35, %c0_36], %53 {strides = array<i32>} : memref<128x1xf32, #tpu.memory_space<vmem>>, vector<128x1xf32>,
    %c1_i32 = arith.constant 1 : i32
    %55 = arith.cmpi eq, %arg1, %c1_i32 : i32
    %56 = arith.extui %55 : i1 to i32
    %c0_i32_37 = arith.constant 0 : i32
    %57 = arith.cmpi ne, %56, %c0_i32_37 : i32
    scf.if %57 {
      %c0_38 = arith.constant 0 : index
      %c0_39 = arith.constant 0 : index
      %58 = vector.load %arg12[%c0_38, %c0_39] : memref<128x1xf32, #tpu.memory_space<vmem>>, vector<128x1xf32>
      %cst_40 = arith.constant 1.000000e-30 : f32
      %59 = vector.broadcast %cst_40 : f32 to vector<128x1xf32>
      %60 = arith.maximumf %58, %59 : vector<128x1xf32>
      %61 = math.log %60 : vector<128x1xf32>
      %c0_41 = arith.constant 0 : index
      %c0_42 = arith.constant 0 : index
      %62 = vector.load %arg11[%c0_41, %c0_42] : memref<128x1xf32, #tpu.memory_space<vmem>>, vector<128x1xf32>
      %63 = arith.addf %61, %62 : vector<128x1xf32>
      %c0_43 = arith.constant 0 : index
      %c0_44 = arith.constant 0 : index
      %64 = vector.load %arg14[%c0_43, %c0_44] : memref<128x1xf32, #tpu.memory_space<vmem>>, vector<128x1xf32>
      %c0_45 = arith.constant 0 : index
      %c0_46 = arith.constant 0 : index
      %65 = vector.load %arg13[%c0_45, %c0_46] : memref<128x1xf32, #tpu.memory_space<vmem>>, vector<128x1xf32>
      %66 = arith.mulf %64, %63 : vector<128x1xf32>
      %67 = arith.subf %65, %66 : vector<128x1xf32>
      %cst_47 = arith.constant 1.000000e+00 : f32
      %68 = vector.broadcast %cst_47 : f32 to vector<128x1xf32>
      %69 = arith.maximumf %64, %68 : vector<128x1xf32>
      %70 = arith.divf %67, %69 : vector<128x1xf32>
      %cst_48 = arith.constant -1.000000e+00 : f32
      %71 = vector.broadcast %cst_48 : f32 to vector<128x1xf32>
      %72 = arith.mulf %71, %70 : vector<128x1xf32>
      %c0_49 = arith.constant 0 : index
      %c0_50 = arith.constant 0 : index
      %73 = vector.load %arg8[%c0_49, %c0_50] : memref<128x1xf32, #tpu.memory_space<vmem>>, vector<128x1xf32>
      %74 = arith.mulf %72, %73 : vector<128x1xf32>
      %c0_51 = arith.constant 0 : index
      %c0_52 = arith.constant 0 : index
      %75 = vector.load %arg10[%c0_51, %c0_52] : memref<128x1xf32, #tpu.memory_space<vmem>>, vector<128x1xf32>
      tpu.vector_store %arg10[%c0_51, %c0_52], %74 {strides = array<i32>} : memref<128x1xf32, #tpu.memory_space<vmem>>, vector<128x1xf32>,
    } else {
    }
    return
  }
  func.func @transform_0(%arg0: i32, %arg1: i32) -> (i32, i32) {
    %c0_i32 = arith.constant 0 : i32
    %c0_i32_0 = arith.constant 0 : i32
    return %arg0, %c0_i32 : i32, i32
  }
  func.func @transform_1(%arg0: i32, %arg1: i32) -> (i32, i32) {
    %c0_i32 = arith.constant 0 : i32
    %c0_i32_0 = arith.constant 0 : i32
    return %arg1, %c0_i32 : i32, i32
  }
  func.func @transform_2(%arg0: i32, %arg1: i32) -> (i32, i32) {
    %c0_i32 = arith.constant 0 : i32
    %c0_i32_0 = arith.constant 0 : i32
    return %arg0, %c0_i32 : i32, i32
  }
  func.func @transform_3(%arg0: i32, %arg1: i32) -> (i32, i32) {
    %c0_i32 = arith.constant 0 : i32
    %c0_i32_0 = arith.constant 0 : i32
    return %c0_i32, %arg1 : i32, i32
  }
  func.func @transform_4(%arg0: i32, %arg1: i32) -> (i32, i32) {
    %c0_i32 = arith.constant 0 : i32
    %c0_i32_0 = arith.constant 0 : i32
    return %arg0, %c0_i32 : i32, i32
  }
  func.func @transform_5(%arg0: i32, %arg1: i32) -> (i32, i32) {
    %c0_i32 = arith.constant 0 : i32
    %c0_i32_0 = arith.constant 0 : i32
    return %c0_i32, %arg1 : i32, i32
  }
  func.func @transform_6(%arg0: i32, %arg1: i32) -> (i32, i32) {
    %c0_i32 = arith.constant 0 : i32
    %c0_i32_0 = arith.constant 0 : i32
    return %arg0, %c0_i32 : i32, i32
  }
  func.func @transform_7(%arg0: i32, %arg1: i32) -> (i32, i32) {
    %c0_i32 = arith.constant 0 : i32
    %c0_i32_0 = arith.constant 0 : i32
    return %c0_i32, %arg1 : i32, i32
  }
  func.func @transform_8(%arg0: i32, %arg1: i32) -> (i32, i32) {
    %c0_i32 = arith.constant 0 : i32
    %c0_i32_0 = arith.constant 0 : i32
    return %arg0, %c0_i32 : i32, i32
  }
}

</mosaic_0001>

<llo_original>
// kernel: tile.24
$region0: #{tile.24}
  #allocation0 [shape = 's32[1]{0}', space=sflag, size = 0x4, scoped, tag = 'scoped memory for tile.24']
  %s0 = inlined_call_operand.vmem [shape: f32[72], index: 0, kind: input, shape index: {}]
  %s1 = inlined_call_operand.vmem [shape: f32[2,72], index: 1, kind: output, shape index: {}]
  // Predicated region
  $region2: #{tile.24} parent=0 // pred_check
    _
  $region3: #{tile.24} parent=0 // pred_check_branch
    %3 = sbr.rel (0) target = $region5
  $region4: #{tile.24} parent=0 // pred_region
    _
  $region5: #{tile.24} parent=0 // pred_fallthru
    _
  %v4 = vld [vmem:[%s0] ss:$0 sm:$0xff]
  %5 = vst [vmem:[%s1] sm:$0x3] %v4

// kernel: tile.18
$region0: #{tile.18}
  %s0 = inlined_call_operand.vmem [shape: s32[12,1,1,6], index: 0, kind: input, shape index: {}]
  %s1 = inlined_call_operand.vmem [shape: s32[72], index: 1, kind: output, shape index: {}]
  $region1: #{tile.18} parent=0
    #allocation0 [shape = 'u8[4096]{0}', space=vmem, size = 0x1000, scoped, tag = 'scoped mem for output reshape']
    %v2 = vld [vmem:[%s0] sm:$0x1]
    %vm3 = vcmask 48128
    %4 = vst.msk [vmem:[#allocation0] sm:$0x1] %vm3, %v2
    %s5 = scalar_lea.vmem %s0, 11
    %v6 = vld [vmem:[%s5] sm:$0x1]
    %7 = vrot.lane.b32.xlu0 %v6, 66
    %v8 = vpop.permute.xlu0 %7
    %vm9 = vcmask 589328
    %10 = vst.msk [vmem:[#allocation0] sm:$0x1] %vm9, %v8
    %s11 = scalar_lea.vmem %s0, 10
    %v12 = vld [vmem:[%s11] sm:$0x1]
    %13 = vrot.lane.b32.xlu0 %v12, 60
    %v14 = vpop.permute.xlu0 %13
    %vm15 = vcmask 540128
    %16 = vst.msk [vmem:[#allocation0] sm:$0x1] %vm15, %v14
    %s17 = scalar_lea.vmem %s0, 9
    %v18 = vld [vmem:[%s17] sm:$0x1]
    %19 = vrot.lane.b32.xlu0 %v18, 54
    %v20 = vpop.permute.xlu0 %19
    %vm21 = vcmask 490928
    %22 = vst.msk [vmem:[#allocation0] sm:$0x1] %vm21, %v20
    %s23 = scalar_lea.vmem %s0, 8
    %v24 = vld [vmem:[%s23] sm:$0x1]
    %25 = vrot.lane.b32.xlu0 %v24, 48
    %v26 = vpop.permute.xlu0 %25
    %vm27 = vcmask 441728
    %28 = vst.msk [vmem:[#allocation0] sm:$0x1] %vm27, %v26
    %s29 = scalar_lea.vmem %s0, 7
    %v30 = vld [vmem:[%s29] sm:$0x1]
    %31 = vrot.lane.b32.xlu0 %v30, 42
    %v32 = vpop.permute.xlu0 %31
    %vm33 = vcmask 392528
    %34 = vst.msk [vmem:[#allocation0] sm:$0x1] %vm33, %v32
    %s35 = scalar_lea.vmem %s0, 6
    %v36 = vld [vmem:[%s35] sm:$0x1]
    %37 = vrot.lane.b32.xlu0 %v36, 36
    %v38 = vpop.permute.xlu0 %37
    %vm39 = vcmask 343328
    %40 = vst.msk [vmem:[#allocation0] sm:$0x1] %vm39, %v38
    %s41 = scalar_lea.vmem %s0, 5
    %v42 = vld [vmem:[%s41] sm:$0x1]
    %43 = vrot.lane.b32.xlu0 %v42, 30
    %v44 = vpop.permute.xlu0 %43
    %vm45 = vcmask 294128
    %46 = vst.msk [vmem:[#allocation0] sm:$0x1] %vm45, %v44
    %s47 = scalar_lea.vmem %s0, 4
    %v48 = vld [vmem:[%s47] sm:$0x1]
    %49 = vrot.lane.b32.xlu0 %v48, 24
    %v50 = vpop.permute.xlu0 %49
    %vm51 = vcmask 244928
    %52 = vst.msk [vmem:[#allocation0] sm:$0x1] %vm51, %v50
    %s53 = scalar_lea.vmem %s0, 3
    %v54 = vld [vmem:[%s53] sm:$0x1]
    %55 = vrot.lane.b32.xlu0 %v54, 18
    %v56 = vpop.permute.xlu0 %55
    %vm57 = vcmask 195728
    %58 = vst.msk [vmem:[#allocation0] sm:$0x1] %vm57, %v56
    %s59 = scalar_lea.vmem %s0, 2
    %v60 = vld [vmem:[%s59] sm:$0x1]
    %61 = vrot.lane.b32.xlu0 %v60, 12
    %v62 = vpop.permute.xlu0 %61
    %vm63 = vcmask 146528
    %64 = vst.msk [vmem:[#allocation0] sm:$0x1] %vm63, %v62
    %s65 = scalar_lea.vmem %s0, 1
    %v66 = vld [vmem:[%s65] sm:$0x1]
    %67 = vrot.lane.b32.xlu0 %v66, 6
    %v68 = vpop.permute.xlu0 %67
    %vm69 = vcmask 97328
    %70 = vst.msk [vmem:[#allocation0] sm:$0x1] %vm69, %v68
    %s72 = sshllo.u32 0, 1
    %v74 = vld [vmem:[#allocation0] sm:%s72]
    %s75 = sshllo.u32 0, 1
    %76 = vst [vmem:[%s1] sm:%s75] %v74

// kernel: tile.19
$region0: #{tile.19}
  #allocation0 [shape = 's32[1]{0}', space=sflag, size = 0x4, scoped, tag = 'scoped memory for tile.19']
  %s0 = inlined_call_operand.vmem [shape: s32[72], index: 0, kind: input, shape index: {}]
  %s1 = inlined_call_operand.vmem [shape: s32[2,72], index: 1, kind: output, shape index: {}]
  // Predicated region
  $region2: #{tile.19} parent=0 // pred_check
    _
  $region3: #{tile.19} parent=0 // pred_check_branch
    %3 = sbr.rel (0) target = $region5
  $region4: #{tile.19} parent=0 // pred_region
    _
  $region5: #{tile.19} parent=0 // pred_fallthru
    _
  %v4 = vld [vmem:[%s0] ss:$0 sm:$0xff]
  %5 = vst [vmem:[%s1] sm:$0x3] %v4

// kernel: joint2joint_loss.1
$region0: #{joint2joint_loss.1}
  #allocation0 [shape = 'u32[]', space=smem, size = 0x4, offset = 0x4, fixed_abs, tag = 'smem constant byte address 0x4 - core index']
  #allocation1 [shape = 'u32[144,128]{1,0:T(1,128)}', space=vmem, size = 0x12000, scoped, tag = 'internal scratch']
  #allocation2 [shape = 'f32[128,1]{1,0:T(8,128)}', space=vmem, size = 0x10000, scoped, tag = 'scratch operand']
  #allocation3 [shape = 'f32[128,1]{1,0:T(8,128)}', space=vmem, size = 0x10000, scoped, tag = 'scratch operand']
  #allocation4 [shape = 'f32[128,1]{1,0:T(8,128)}', space=vmem, size = 0x10000, scoped, tag = 'scratch operand']
  #allocation5 [shape = 'f32[128,1]{1,0:T(8,128)}', space=vmem, size = 0x10000, scoped, tag = 'scratch operand']
  %s0 = inlined_call_operand.vmem [shape: bf16[256,128], index: 0, kind: input, shape index: {}, may-alias: {0,1}]
  %s1 = inlined_call_operand.vmem [shape: bf16[256,128], index: 1, kind: input, shape index: {}, may-alias: {0,1}]
  %s2 = inlined_call_operand.vmem [shape: s32[256,1], index: 2, kind: input, shape index: {}]
  %s3 = inlined_call_operand.vmem [shape: s32[1,256], index: 3, kind: input, shape index: {}]
  %s4 = inlined_call_operand.vmem [shape: s32[256,1], index: 4, kind: input, shape index: {}]
  %s5 = inlined_call_operand.vmem [shape: s32[1,256], index: 5, kind: input, shape index: {}]
  %s6 = inlined_call_operand.vmem [shape: f32[256,1], index: 6, kind: input, shape index: {}]
  %s7 = inlined_call_operand.vmem [shape: f32[1,256], index: 7, kind: input, shape index: {}]
  %s8 = inlined_call_operand.vmem [shape: f32[256,1], index: 8, kind: output, shape index: {}]
  %s9 = sld [smem:[#allocation0]]
  $region73: #{joint2joint_loss.1} parent=0
    _
  %s11 = ssub.s32 1, %s9
  %s12 = scalar_select 0, %s11, %s9
  loop: start=0, step=1, limit=6
  $region2: #{joint2joint_loss.1} parent=0 // loop_pre_header
    _
  $region3: #{joint2joint_loss.1} parent=0 // loop_header
    %s14 = sphi 0, %s18
    %p15 = scmp.ge.s32.totalorder %s14, 6
    %s21 = sphi 0, %s33
    %s22 = sphi 0, %s29
    %s23 = sphi 0, %s21
    %s24 = sphi 0, %s22
    %s25 = sphi 0, %s23
    %s26 = sphi 0, %s24
    %s36 = sphi 0, %s38
    %s39 = sphi 0, %s36
    %s40 = sphi 0, %s39
    %s56 = sphi 0, %s40
    %s62 = sphi 0, %s64
    %s65 = sphi 0, %s62
    %s66 = sphi 0, %s65
    %s82 = sphi 0, %s66
    %s88 = sphi 0, %s90
    %s91 = sphi 0, %s88
    %s92 = sphi 0, %s91
    %s108 = sphi 0, %s92
    %s114 = sphi 0, %s116
    %s117 = sphi 0, %s114
    %s118 = sphi 0, %s117
    %s134 = sphi 0, %s118
    %s140 = sphi 0, %s142
    %s143 = sphi 0, %s140
    %s144 = sphi 0, %s143
    %s160 = sphi 0, %s144
    %s166 = sphi 0, %s168
    %s169 = sphi 0, %s166
    %s170 = sphi 0, %s169
    %s186 = sphi 0, %s170
    %s192 = sphi 0, %s194
    %s195 = sphi 0, %s192
    %s196 = sphi 0, %s195
    %s212 = sphi 0, %s196
    %s218 = sphi 0, %s220
    %s221 = sphi 0, %s218
    %s222 = sphi 0, %s221
    %s238 = sphi 0, %s222
    %s244 = sphi 0, %s246
    %s247 = sphi 0, %s244
    %s248 = sphi 0, %s247
    %s264 = sphi 0, %s248
  $region4: #{joint2joint_loss.1} parent=0 // loop_header_branch
    %17 = sbr.rel (%p15) target = $region8
  $region5: #{joint2joint_loss.1} parent=0 // loop_body
    %s19 = ssub.s32 %s14, 1
    %s20 = ssub.s32 %s14, 2
    %s27 = sadd.s32 1, %s22
    %p28 = scmp.ge.s32.totalorder %s27, 2
    %s29 = scalar_select %p28, 0, %s27
    %s30 = sadd.s32 1, %s21
    %s31 = scalar_select %p28, %s30, %s21
    %p32 = scmp.ge.s32.totalorder %s31, 2
    %s33 = scalar_select %p32, 0, %s31
    %s34 = ssub.s32 %s21, %s33
    %p35 = scmp.eq.s32.totalorder %s34, 0
    %s37 = sadd.s32 %s36, 1
    %s38 = scalar_select %p35, %s36, %s37
    %p41 = pneg %p35
    %p42 = scmp.eq.s32.totalorder %s14, 3
    %p43 = por %p41, %p42
    %p44 = scmp.ne.s32.totalorder %s36, %s39
    %p45 = scmp.eq.s32.totalorder %s14, 0
    %p46 = por %p44, %p45
    %p47 = scmp.ne.s32.totalorder %s36, %s39
    %p48 = scmp.eq.s32.totalorder %s19, 3
    %p49 = por %p47, %p48
    %p50 = scmp.ne.s32.totalorder %s39, %s40
    %p51 = scmp.eq.s32.totalorder %s19, 0
    %p52 = por %p50, %p51
    %p53 = scmp.ne.s32.totalorder %s39, %s40
    %p54 = scmp.eq.s32.totalorder %s20, 3
    %p55 = por %p53, %p54
    %p57 = scmp.ne.s32.totalorder %s40, %s56
    %p58 = scmp.eq.s32.totalorder %s20, 0
    %p59 = por %p57, %p58
    %s60 = ssub.s32 %s22, %s29
    %p61 = scmp.eq.s32.totalorder %s60, 0
    %s63 = sadd.s32 %s62, 1
    %s64 = scalar_select %p61, %s62, %s63
    %p67 = pneg %p61
    %p68 = scmp.eq.s32.totalorder %s14, 3
    %p69 = por %p67, %p68
    %p70 = scmp.ne.s32.totalorder %s62, %s65
    %p71 = scmp.eq.s32.totalorder %s14, 0
    %p72 = por %p70, %p71
    %p73 = scmp.ne.s32.totalorder %s62, %s65
    %p74 = scmp.eq.s32.totalorder %s19, 3
    %p75 = por %p73, %p74
    %p76 = scmp.ne.s32.totalorder %s65, %s66
    %p77 = scmp.eq.s32.totalorder %s19, 0
    %p78 = por %p76, %p77
    %p79 = scmp.ne.s32.totalorder %s65, %s66
    %p80 = scmp.eq.s32.totalorder %s20, 3
    %p81 = por %p79, %p80
    %p83 = scmp.ne.s32.totalorder %s66, %s82
    %p84 = scmp.eq.s32.totalorder %s20, 0
    %p85 = por %p83, %p84
    %s86 = ssub.s32 %s21, %s33
    %p87 = scmp.eq.s32.totalorder %s86, 0
    %s89 = sadd.s32 %s88, 1
    %s90 = scalar_select %p87, %s88, %s89
    %p93 = pneg %p87
    %p94 = scmp.eq.s32.totalorder %s14, 3
    %p95 = por %p93, %p94
    %p96 = scmp.ne.s32.totalorder %s88, %s91
    %p97 = scmp.eq.s32.totalorder %s14, 0
    %p98 = por %p96, %p97
    %p99 = scmp.ne.s32.totalorder %s88, %s91
    %p100 = scmp.eq.s32.totalorder %s19, 3
    %p101 = por %p99, %p100
    %p102 = scmp.ne.s32.totalorder %s91, %s92
    %p103 = scmp.eq.s32.totalorder %s19, 0
    %p104 = por %p102, %p103
    %p105 = scmp.ne.s32.totalorder %s91, %s92
    %p106 = scmp.eq.s32.totalorder %s20, 3
    %p107 = por %p105, %p106
    %p109 = scmp.ne.s32.totalorder %s92, %s108
    %p110 = scmp.eq.s32.totalorder %s20, 0
    %p111 = por %p109, %p110
    %s112 = ssub.s32 %s22, %s29
    %p113 = scmp.eq.s32.totalorder %s112, 0
    %s115 = sadd.s32 %s114, 1
    %s116 = scalar_select %p113, %s114, %s115
    %p119 = pneg %p113
    %p120 = scmp.eq.s32.totalorder %s14, 3
    %p121 = por %p119, %p120
    %p122 = scmp.ne.s32.totalorder %s114, %s117
    %p123 = scmp.eq.s32.totalorder %s14, 0
    %p124 = por %p122, %p123
    %p125 = scmp.ne.s32.totalorder %s114, %s117
    %p126 = scmp.eq.s32.totalorder %s19, 3
    %p127 = por %p125, %p126
    %p128 = scmp.ne.s32.totalorder %s117, %s118
    %p129 = scmp.eq.s32.totalorder %s19, 0
    %p130 = por %p128, %p129
    %p131 = scmp.ne.s32.totalorder %s117, %s118
    %p132 = scmp.eq.s32.totalorder %s20, 3
    %p133 = por %p131, %p132
    %p135 = scmp.ne.s32.totalorder %s118, %s134
    %p136 = scmp.eq.s32.totalorder %s20, 0
    %p137 = por %p135, %p136
    %s138 = ssub.s32 %s21, %s33
    %p139 = scmp.eq.s32.totalorder %s138, 0
    %s141 = sadd.s32 %s140, 1
    %s142 = scalar_select %p139, %s140, %s141
    %p145 = pneg %p139
    %p146 = scmp.eq.s32.totalorder %s14, 3
    %p147 = por %p145, %p146
    %p148 = scmp.ne.s32.totalorder %s140, %s143
    %p149 = scmp.eq.s32.totalorder %s14, 0
    %p150 = por %p148, %p149
    %p151 = scmp.ne.s32.totalorder %s140, %s143
    %p152 = scmp.eq.s32.totalorder %s19, 3
    %p153 = por %p151, %p152
    %p154 = scmp.ne.s32.totalorder %s143, %s144
    %p155 = scmp.eq.s32.totalorder %s19, 0
    %p156 = por %p154, %p155
    %p157 = scmp.ne.s32.totalorder %s143, %s144
    %p158 = scmp.eq.s32.totalorder %s20, 3
    %p159 = por %p157, %p158
    %p161 = scmp.ne.s32.totalorder %s144, %s160
    %p162 = scmp.eq.s32.totalorder %s20, 0
    %p163 = por %p161, %p162
    %s164 = ssub.s32 %s22, %s29
    %p165 = scmp.eq.s32.totalorder %s164, 0
    %s167 = sadd.s32 %s166, 1
    %s168 = scalar_select %p165, %s166, %s167
    %p171 = pneg %p165
    %p172 = scmp.eq.s32.totalorder %s14, 3
    %p173 = por %p171, %p172
    %p174 = scmp.ne.s32.totalorder %s166, %s169
    %p175 = scmp.eq.s32.totalorder %s14, 0
    %p176 = por %p174, %p175
    %p177 = scmp.ne.s32.totalorder %s166, %s169
    %p178 = scmp.eq.s32.totalorder %s19, 3
    %p179 = por %p177, %p178
    %p180 = scmp.ne.s32.totalorder %s169, %s170
    %p181 = scmp.eq.s32.totalorder %s19, 0
    %p182 = por %p180, %p181
    %p183 = scmp.ne.s32.totalorder %s169, %s170
    %p184 = scmp.eq.s32.totalorder %s20, 3
    %p185 = por %p183, %p184
    %p187 = scmp.ne.s32.totalorder %s170, %s186
    %p188 = scmp.eq.s32.totalorder %s20, 0
    %p189 = por %p187, %p188
    %s190 = ssub.s32 %s21, %s33
    %p191 = scmp.eq.s32.totalorder %s190, 0
    %s193 = sadd.s32 %s192, 1
    %s194 = scalar_select %p191, %s192, %s193
    %p197 = pneg %p191
    %p198 = scmp.eq.s32.totalorder %s14, 3
    %p199 = por %p197, %p198
    %p200 = scmp.ne.s32.totalorder %s192, %s195
    %p201 = scmp.eq.s32.totalorder %s14, 0
    %p202 = por %p200, %p201
    %p203 = scmp.ne.s32.totalorder %s192, %s195
    %p204 = scmp.eq.s32.totalorder %s19, 3
    %p205 = por %p203, %p204
    %p206 = scmp.ne.s32.totalorder %s195, %s196
    %p207 = scmp.eq.s32.totalorder %s19, 0
    %p208 = por %p206, %p207
    %p209 = scmp.ne.s32.totalorder %s195, %s196
    %p210 = scmp.eq.s32.totalorder %s20, 3
    %p211 = por %p209, %p210
    %p213 = scmp.ne.s32.totalorder %s196, %s212
    %p214 = scmp.eq.s32.totalorder %s20, 0
    %p215 = por %p213, %p214
    %s216 = ssub.s32 %s22, %s29
    %p217 = scmp.eq.s32.totalorder %s216, 0
    %s219 = sadd.s32 %s218, 1
    %s220 = scalar_select %p217, %s218, %s219
    %p223 = pneg %p217
    %p224 = scmp.eq.s32.totalorder %s14, 3
    %p225 = por %p223, %p224
    %p226 = scmp.ne.s32.totalorder %s218, %s221
    %p227 = scmp.eq.s32.totalorder %s14, 0
    %p228 = por %p226, %p227
    %p229 = scmp.ne.s32.totalorder %s218, %s221
    %p230 = scmp.eq.s32.totalorder %s19, 3
    %p231 = por %p229, %p230
    %p232 = scmp.ne.s32.totalorder %s221, %s222
    %p233 = scmp.eq.s32.totalorder %s19, 0
    %p234 = por %p232, %p233
    %p235 = scmp.ne.s32.totalorder %s221, %s222
    %p236 = scmp.eq.s32.totalorder %s20, 3
    %p237 = por %p235, %p236
    %p239 = scmp.ne.s32.totalorder %s222, %s238
    %p240 = scmp.eq.s32.totalorder %s20, 0
    %p241 = por %p239, %p240
    %s242 = ssub.s32 %s21, %s33
    %p243 = scmp.eq.s32.totalorder %s242, 0
    %s245 = sadd.s32 %s244, 1
    %s246 = scalar_select %p243, %s244, %s245
    %p249 = pneg %p243
    %p250 = scmp.eq.s32.totalorder %s14, 3
    %p251 = por %p249, %p250
    %p252 = scmp.ne.s32.totalorder %s244, %s247
    %p253 = scmp.eq.s32.totalorder %s14, 0
    %p254 = por %p252, %p253
    %p255 = scmp.ne.s32.totalorder %s244, %s247
    %p256 = scmp.eq.s32.totalorder %s19, 3
    %p257 = por %p255, %p256
    %p258 = scmp.ne.s32.totalorder %s247, %s248
    %p259 = scmp.eq.s32.totalorder %s19, 0
    %p260 = por %p258, %p259
    %p261 = scmp.ne.s32.totalorder %s247, %s248
    %p262 = scmp.eq.s32.totalorder %s20, 3
    %p263 = por %p261, %p262
    %p265 = scmp.ne.s32.totalorder %s248, %s264
    %p266 = scmp.eq.s32.totalorder %s20, 0
    %p267 = por %p265, %p266
    %p268 = scmp.le.s32.totalorder 1, %s14
    %p269 = scmp.lt.s32.totalorder %s14, 5
    %p270 = pnand %p268, %p269
    %p271 = pneg %p270
    // Predicated region
    $region9: #{joint2joint_loss.1} parent=5 // pred_check
      _
    $region10: #{joint2joint_loss.1} parent=5 // pred_check_branch
      %273 = sbr.rel (%p270) target = $region12
    $region11: #{joint2joint_loss.1} parent=5 // pred_region
      %s274 = ssub.s32 %s14, 1
    $region12: #{joint2joint_loss.1} parent=5 // pred_fallthru
      _
    %p275 = scmp.lt.s32.totalorder %s14, 4
    // Predicated region
    $region13: #{joint2joint_loss.1} parent=5 // pred_check
      %p276 = pneg %p275
    $region14: #{joint2joint_loss.1} parent=5 // pred_check_branch
      %278 = sbr.rel (%p276) target = $region16
    $region15: #{joint2joint_loss.1} parent=5 // pred_region
      // Predicated region
      $region17: #{joint2joint_loss.1} parent=15 // pred_check
        %p279 = pneg %p46
      $region18: #{joint2joint_loss.1} parent=15 // pred_check_branch
        %281 = sbr.rel (%p279) target = $region20
      $region19: #{joint2joint_loss.1} parent=15 // pred_region
        %s282 = smul.u32 16, %s21
        %p283 = scmp.lt.s32.totalorder %s282, 31
        %s284 = scalar_select %p283, %s282, 31
        %s285 = smul.addr %s284, 4
        %s286 = scalar_lea.vmem %s0, %s285
        %s287 = smul.u32 16, %s21
      $region20: #{joint2joint_loss.1} parent=15 // pred_fallthru
        _
      // Predicated region
      $region21: #{joint2joint_loss.1} parent=15 // pred_check
        %p288 = pneg %p72
      $region22: #{joint2joint_loss.1} parent=15 // pred_check_branch
        %290 = sbr.rel (%p288) target = $region24
      $region23: #{joint2joint_loss.1} parent=15 // pred_region
        %s291 = smul.u32 16, %s22
        %p292 = scmp.lt.s32.totalorder %s291, 31
        %s293 = scalar_select %p292, %s291, 31
        %s294 = smul.addr %s293, 4
        %s295 = scalar_lea.vmem %s1, %s294
        %s296 = smul.u32 16, %s22
      $region24: #{joint2joint_loss.1} parent=15 // pred_fallthru
        _
      // Predicated region
      $region25: #{joint2joint_loss.1} parent=15 // pred_check
        %p297 = pneg %p98
      $region26: #{joint2joint_loss.1} parent=15 // pred_check_branch
        %299 = sbr.rel (%p297) target = $region28
      $region27: #{joint2joint_loss.1} parent=15 // pred_region
        %s300 = smul.u32 16, %s21
        %p301 = scmp.lt.s32.totalorder %s300, 31
        %s302 = scalar_select %p301, %s300, 31
        %s303 = smul.addr %s302, 8
        %s304 = scalar_lea.vmem %s2, %s303
        %s305 = smul.u32 16, %s21
      $region28: #{joint2joint_loss.1} parent=15 // pred_fallthru
        _
      // Predicated region
      $region29: #{joint2joint_loss.1} parent=15 // pred_check
        %p306 = pneg %p124
      $region30: #{joint2joint_loss.1} parent=15 // pred_check_branch
        %308 = sbr.rel (%p306) target = $region32
      $region31: #{joint2joint_loss.1} parent=15 // pred_region
        %p309 = scmp.lt.s32.totalorder %s22, 1
        %s310 = scalar_select %p309, %s22, 1
        %s311 = scalar_lea.vmem %s3, %s310
      $region32: #{joint2joint_loss.1} parent=15 // pred_fallthru
        _
      // Predicated region
      $region33: #{joint2joint_loss.1} parent=15 // pred_check
        %p312 = pneg %p150
      $region34: #{joint2joint_loss.1} parent=15 // pred_check_branch
        %314 = sbr.rel (%p312) target = $region36
      $region35: #{joint2joint_loss.1} parent=15 // pred_region
        %s315 = smul.u32 16, %s21
        %p316 = scmp.lt.s32.totalorder %s315, 31
        %s317 = scalar_select %p316, %s315, 31
        %s318 = smul.addr %s317, 8
        %s319 = scalar_lea.vmem %s4, %s318
        %s320 = smul.u32 16, %s21
      $region36: #{joint2joint_loss.1} parent=15 // pred_fallthru
        _
      // Predicated region
      $region37: #{joint2joint_loss.1} parent=15 // pred_check
        %p321 = pneg %p176
      $region38: #{joint2joint_loss.1} parent=15 // pred_check_branch
        %323 = sbr.rel (%p321) target = $region40
      $region39: #{joint2joint_loss.1} parent=15 // pred_region
        %p324 = scmp.lt.s32.totalorder %s22, 1
        %s325 = scalar_select %p324, %s22, 1
        %s326 = scalar_lea.vmem %s5, %s325
      $region40: #{joint2joint_loss.1} parent=15 // pred_fallthru
        _
      // Predicated region
      $region41: #{joint2joint_loss.1} parent=15 // pred_check
        %p327 = pneg %p202
      $region42: #{joint2joint_loss.1} parent=15 // pred_check_branch
        %329 = sbr.rel (%p327) target = $region44
      $region43: #{joint2joint_loss.1} parent=15 // pred_region
        %s330 = smul.u32 16, %s21
        %p331 = scmp.lt.s32.totalorder %s330, 31
        %s332 = scalar_select %p331, %s330, 31
        %s333 = smul.addr %s332, 8
        %s334 = scalar_lea.vmem %s6, %s333
        %s335 = smul.u32 16, %s21
      $region44: #{joint2joint_loss.1} parent=15 // pred_fallthru
        _
      // Predicated region
      $region45: #{joint2joint_loss.1} parent=15 // pred_check
        %p336 = pneg %p228
      $region46: #{joint2joint_loss.1} parent=15 // pred_check_branch
        %338 = sbr.rel (%p336) target = $region48
      $region47: #{joint2joint_loss.1} parent=15 // pred_region
        %p339 = scmp.lt.s32.totalorder %s22, 1
        %s340 = scalar_select %p339, %s22, 1
        %s341 = scalar_lea.vmem %s7, %s340
      $region48: #{joint2joint_loss.1} parent=15 // pred_fallthru
        _
    $region16: #{joint2joint_loss.1} parent=5 // pred_fallthru
      _
    %p342 = scmp.le.s32.totalorder 1, %s14
    %p343 = scmp.lt.s32.totalorder %s14, 5
    %p344 = pnand %p342, %p343
    %p345 = pneg %p344
    // Predicated region
    $region49: #{joint2joint_loss.1} parent=5 // pred_check
      _
    $region50: #{joint2joint_loss.1} parent=5 // pred_check_branch
      %347 = sbr.rel (%p344) target = $region52
    $region51: #{joint2joint_loss.1} parent=5 // pred_region
      %s348 = ssub.s32 %s14, 1
      %s349 = smul.u32 16, %s23
      %p350 = scmp.lt.s32.totalorder %s349, 31
      %s351 = scalar_select %p350, %s349, 31
      %s352 = smul.addr %s351, 4
      %s353 = scalar_lea.vmem %s0, %s352
      %p354 = pneg %p52
      %p355 = pneg %p49
      %s356 = smul.u32 16, %s24
      %p357 = scmp.lt.s32.totalorder %s356, 31
      %s358 = scalar_select %p357, %s356, 31
      %s359 = smul.addr %s358, 4
      %s360 = scalar_lea.vmem %s1, %s359
      %p361 = pneg %p78
      %p362 = pneg %p75
      %s363 = smul.u32 16, %s23
      %p364 = scmp.lt.s32.totalorder %s363, 31
      %s365 = scalar_select %p364, %s363, 31
      %s366 = smul.addr %s365, 8
      %s367 = scalar_lea.vmem %s2, %s366
      %p368 = pneg %p104
      %p369 = pneg %p101
      %p370 = scmp.lt.s32.totalorder %s24, 1
      %s371 = scalar_select %p370, %s24, 1
      %s372 = scalar_lea.vmem %s3, %s371
      %p373 = pneg %p130
      %p374 = pneg %p127
      %s375 = smul.u32 16, %s23
      %p376 = scmp.lt.s32.totalorder %s375, 31
      %s377 = scalar_select %p376, %s375, 31
      %s378 = smul.addr %s377, 8
      %s379 = scalar_lea.vmem %s4, %s378
      %p380 = pneg %p156
      %p381 = pneg %p153
      %p382 = scmp.lt.s32.totalorder %s24, 1
      %s383 = scalar_select %p382, %s24, 1
      %s384 = scalar_lea.vmem %s5, %s383
      %p385 = pneg %p182
      %p386 = pneg %p179
      %s387 = smul.u32 16, %s23
      %p388 = scmp.lt.s32.totalorder %s387, 31
      %s389 = scalar_select %p388, %s387, 31
      %s390 = smul.addr %s389, 8
      %s391 = scalar_lea.vmem %s6, %s390
      %p392 = pneg %p208
      %p393 = pneg %p205
      %p394 = scmp.lt.s32.totalorder %s24, 1
      %s395 = scalar_select %p394, %s24, 1
      %s396 = scalar_lea.vmem %s7, %s395
      %p397 = pneg %p234
      %p398 = pneg %p231
      %p399 = pneg %p260
      %p400 = pneg %p257
      %s401 = smul.u32 16, %s23
      %p402 = scmp.lt.s32.totalorder %s401, 31
      %s403 = scalar_select %p402, %s401, 31
      %s404 = smul.addr %s403, 8
      %s405 = scalar_lea.vmem %s8, %s404
      %s406 = smul.u32 16, %s23
      %p407 = scmp.lt.s32.totalorder %s406, 31
      %s408 = scalar_select %p407, %s406, 31
      %s409 = smul.addr %s408, 4
      %s410 = scalar_lea.vmem %s0, %s409
      %s411 = smul.u32 16, %s23
      %s412 = smul.u32 16, %s24
      %p413 = scmp.lt.s32.totalorder %s412, 31
      %s414 = scalar_select %p413, %s412, 31
      %s415 = smul.addr %s414, 4
      %s416 = scalar_lea.vmem %s1, %s415
      %s417 = smul.u32 16, %s24
      %s418 = smul.u32 16, %s23
      %p419 = scmp.lt.s32.totalorder %s418, 31
      %s420 = scalar_select %p419, %s418, 31
      %s421 = smul.addr %s420, 8
      %s422 = scalar_lea.vmem %s2, %s421
      %s423 = smul.u32 16, %s23
      %p424 = scmp.lt.s32.totalorder %s24, 1
      %s425 = scalar_select %p424, %s24, 1
      %s426 = scalar_lea.vmem %s3, %s425
      %s427 = smul.u32 16, %s23
      %p428 = scmp.lt.s32.totalorder %s427, 31
      %s429 = scalar_select %p428, %s427, 31
      %s430 = smul.addr %s429, 8
      %s431 = scalar_lea.vmem %s4, %s430
      %s432 = smul.u32 16, %s23
      %p433 = scmp.lt.s32.totalorder %s24, 1
      %s434 = scalar_select %p433, %s24, 1
      %s435 = scalar_lea.vmem %s5, %s434
      %s436 = smul.u32 16, %s23
      %p437 = scmp.lt.s32.totalorder %s436, 31
      %s438 = scalar_select %p437, %s436, 31
      %s439 = smul.addr %s438, 8
      %s440 = scalar_lea.vmem %s6, %s439
      %s441 = smul.u32 16, %s23
      %p442 = scmp.lt.s32.totalorder %s24, 1
      %s443 = scalar_select %p442, %s24, 1
      %s444 = scalar_lea.vmem %s7, %s443
      %s445 = smul.u32 16, %s23
      %p446 = scmp.lt.s32.totalorder %s445, 31
      %s447 = scalar_select %p446, %s445, 31
      %s448 = smul.addr %s447, 8
      %s449 = scalar_lea.vmem %s8, %s448
      %s450 = smul.u32 16, %s23
      %p452 = scmp.eq.s32.totalorder %s24, 0
      // Predicated region
      $region53: #{joint2joint_loss.1} parent=51 // pred_check
        %p453 = pneg %p452
      $region54: #{joint2joint_loss.1} parent=51 // pred_check_branch
        %455 = sbr.rel (%p453) target = $region56
      $region55: #{joint2joint_loss.1} parent=51 // pred_region
        %vm456 = vcmask 7168
        %457 = vst.msk [vmem:[#allocation2] sm:$0xff] %vm456, -1e+30
        %458 = vst.msk [vmem:[#allocation2 + $0x8] sm:$0xff] %vm456, -1e+30
        %459 = vst.msk [vmem:[#allocation2 + $0x10] sm:$0xff] %vm456, -1e+30
        %460 = vst.msk [vmem:[#allocation2 + $0x18] sm:$0xff] %vm456, -1e+30
        %461 = vst.msk [vmem:[#allocation2 + $0x20] sm:$0xff] %vm456, -1e+30
        %462 = vst.msk [vmem:[#allocation2 + $0x28] sm:$0xff] %vm456, -1e+30
        %463 = vst.msk [vmem:[#allocation2 + $0x30] sm:$0xff] %vm456, -1e+30
        %464 = vst.msk [vmem:[#allocation2 + $0x38] sm:$0xff] %vm456, -1e+30
        %465 = vst.msk [vmem:[#allocation2 + $0x40] sm:$0xff] %vm456, -1e+30
        %466 = vst.msk [vmem:[#allocation2 + $0x48] sm:$0xff] %vm456, -1e+30
        %467 = vst.msk [vmem:[#allocation2 + $0x50] sm:$0xff] %vm456, -1e+30
        %468 = vst.msk [vmem:[#allocation2 + $0x58] sm:$0xff] %vm456, -1e+30
        %469 = vst.msk [vmem:[#allocation2 + $0x60] sm:$0xff] %vm456, -1e+30
        %470 = vst.msk [vmem:[#allocation2 + $0x68] sm:$0xff] %vm456, -1e+30
        %471 = vst.msk [vmem:[#allocation2 + $0x70] sm:$0xff] %vm456, -1e+30
        %472 = vst.msk [vmem:[#allocation2 + $0x78] sm:$0xff] %vm456, -1e+30
        %473 = vst.msk [vmem:[#allocation3] sm:$0xff] %vm456, 0.0
        %474 = vst.msk [vmem:[#allocation3 + $0x8] sm:$0xff] %vm456, 0.0
        %475 = vst.msk [vmem:[#allocation3 + $0x10] sm:$0xff] %vm456, 0.0
        %476 = vst.msk [vmem:[#allocation3 + $0x18] sm:$0xff] %vm456, 0.0
        %477 = vst.msk [vmem:[#allocation3 + $0x20] sm:$0xff] %vm456, 0.0
        %478 = vst.msk [vmem:[#allocation3 + $0x28] sm:$0xff] %vm456, 0.0
        %479 = vst.msk [vmem:[#allocation3 + $0x30] sm:$0xff] %vm456, 0.0
        %480 = vst.msk [vmem:[#allocation3 + $0x38] sm:$0xff] %vm456, 0.0
        %481 = vst.msk [vmem:[#allocation3 + $0x40] sm:$0xff] %vm456, 0.0
        %482 = vst.msk [vmem:[#allocation3 + $0x48] sm:$0xff] %vm456, 0.0
        %483 = vst.msk [vmem:[#allocation3 + $0x50] sm:$0xff] %vm456, 0.0
        %484 = vst.msk [vmem:[#allocation3 + $0x58] sm:$0xff] %vm456, 0.0
        %485 = vst.msk [vmem:[#allocation3 + $0x60] sm:$0xff] %vm456, 0.0
        %486 = vst.msk [vmem:[#allocation3 + $0x68] sm:$0xff] %vm456, 0.0
        %487 = vst.msk [vmem:[#allocation3 + $0x70] sm:$0xff] %vm456, 0.0
        %488 = vst.msk [vmem:[#allocation3 + $0x78] sm:$0xff] %vm456, 0.0
        %489 = vst.msk [vmem:[#allocation4] sm:$0xff] %vm456, 0.0
        %490 = vst.msk [vmem:[#allocation4 + $0x8] sm:$0xff] %vm456, 0.0
        %491 = vst.msk [vmem:[#allocation4 + $0x10] sm:$0xff] %vm456, 0.0
        %492 = vst.msk [vmem:[#allocation4 + $0x18] sm:$0xff] %vm456, 0.0
        %493 = vst.msk [vmem:[#allocation4 + $0x20] sm:$0xff] %vm456, 0.0
        %494 = vst.msk [vmem:[#allocation4 + $0x28] sm:$0xff] %vm456, 0.0
        %495 = vst.msk [vmem:[#allocation4 + $0x30] sm:$0xff] %vm456, 0.0
        %496 = vst.msk [vmem:[#allocation4 + $0x38] sm:$0xff] %vm456, 0.0
        %497 = vst.msk [vmem:[#allocation4 + $0x40] sm:$0xff] %vm456, 0.0
        %498 = vst.msk [vmem:[#allocation4 + $0x48] sm:$0xff] %vm456, 0.0
        %499 = vst.msk [vmem:[#allocation4 + $0x50] sm:$0xff] %vm456, 0.0
        %500 = vst.msk [vmem:[#allocation4 + $0x58] sm:$0xff] %vm456, 0.0
        %501 = vst.msk [vmem:[#allocation4 + $0x60] sm:$0xff] %vm456, 0.0
        %502 = vst.msk [vmem:[#allocation4 + $0x68] sm:$0xff] %vm456, 0.0
        %503 = vst.msk [vmem:[#allocation4 + $0x70] sm:$0xff] %vm456, 0.0
        %504 = vst.msk [vmem:[#allocation4 + $0x78] sm:$0xff] %vm456, 0.0
        %505 = vst.msk [vmem:[#allocation5] sm:$0xff] %vm456, 0.0
        %506 = vst.msk [vmem:[#allocation5 + $0x8] sm:$0xff] %vm456, 0.0
        %507 = vst.msk [vmem:[#allocation5 + $0x10] sm:$0xff] %vm456, 0.0
        %508 = vst.msk [vmem:[#allocation5 + $0x18] sm:$0xff] %vm456, 0.0
        %509 = vst.msk [vmem:[#allocation5 + $0x20] sm:$0xff] %vm456, 0.0
        %510 = vst.msk [vmem:[#allocation5 + $0x28] sm:$0xff] %vm456, 0.0
        %511 = vst.msk [vmem:[#allocation5 + $0x30] sm:$0xff] %vm456, 0.0
        %512 = vst.msk [vmem:[#allocation5 + $0x38] sm:$0xff] %vm456, 0.0
        %513 = vst.msk [vmem:[#allocation5 + $0x40] sm:$0xff] %vm456, 0.0
        %514 = vst.msk [vmem:[#allocation5 + $0x48] sm:$0xff] %vm456, 0.0
        %515 = vst.msk [vmem:[#allocation5 + $0x50] sm:$0xff] %vm456, 0.0
        %516 = vst.msk [vmem:[#allocation5 + $0x58] sm:$0xff] %vm456, 0.0
        %517 = vst.msk [vmem:[#allocation5 + $0x60] sm:$0xff] %vm456, 0.0
        %518 = vst.msk [vmem:[#allocation5 + $0x68] sm:$0xff] %vm456, 0.0
        %519 = vst.msk [vmem:[#allocation5 + $0x70] sm:$0xff] %vm456, 0.0
        %520 = vst.msk [vmem:[#allocation5 + $0x78] sm:$0xff] %vm456, 0.0
      $region56: #{joint2joint_loss.1} parent=51 // pred_fallthru
        _
      %v521 = vld [vmem:[%s410] sm:$0xf]
      %v522 = vld [vmem:[%s410 + $0x4] sm:$0xf]
      %v523 = vld [vmem:[%s410 + $0x8] sm:$0xf]
      %v524 = vld [vmem:[%s410 + $0xc] sm:$0xf]
      %v525 = vld [vmem:[%s410 + $0x10] sm:$0xf]
      %v526 = vld [vmem:[%s410 + $0x14] sm:$0xf]
      %v527 = vld [vmem:[%s410 + $0x18] sm:$0xf]
      %v528 = vld [vmem:[%s410 + $0x1c] sm:$0xf]
      %v529 = vld [vmem:[%s410 + $0x20] sm:$0xf]
      %v530 = vld [vmem:[%s410 + $0x24] sm:$0xf]
      %v531 = vld [vmem:[%s410 + $0x28] sm:$0xf]
      %v532 = vld [vmem:[%s410 + $0x2c] sm:$0xf]
      %v533 = vld [vmem:[%s410 + $0x30] sm:$0xf]
      %v534 = vld [vmem:[%s410 + $0x34] sm:$0xf]
      %v535 = vld [vmem:[%s410 + $0x38] sm:$0xf]
      %v536 = vld [vmem:[%s410 + $0x3c] sm:$0xf]
      %v537 = vld [vmem:[%s416] sm:$0xf]
      %v538 = vld [vmem:[%s416 + $0x4] sm:$0xf]
      %v539 = vld [vmem:[%s416 + $0x8] sm:$0xf]
      %v540 = vld [vmem:[%s416 + $0xc] sm:$0xf]
      %v541 = vld [vmem:[%s416 + $0x10] sm:$0xf]
      %v542 = vld [vmem:[%s416 + $0x14] sm:$0xf]
      %v543 = vld [vmem:[%s416 + $0x18] sm:$0xf]
      %v544 = vld [vmem:[%s416 + $0x1c] sm:$0xf]
      %v545 = vld [vmem:[%s416 + $0x20] sm:$0xf]
      %v546 = vld [vmem:[%s416 + $0x24] sm:$0xf]
      %v547 = vld [vmem:[%s416 + $0x28] sm:$0xf]
      %v548 = vld [vmem:[%s416 + $0x2c] sm:$0xf]
      %v549 = vld [vmem:[%s416 + $0x30] sm:$0xf]
      %v550 = vld [vmem:[%s416 + $0x34] sm:$0xf]
      %v551 = vld [vmem:[%s416 + $0x38] sm:$0xf]
      %v552 = vld [vmem:[%s416 + $0x3c] sm:$0xf]
      %v569 = vunpack.c.l.b16 %v521
      %v570 = vunpack.c.l.b16 %v522
      %v571 = vunpack.c.l.b16 %v523
      %v572 = vunpack.c.l.b16 %v524
      %v573 = vunpack.c.l.b16 %v525
      %v574 = vunpack.c.l.b16 %v526
      %v575 = vunpack.c.l.b16 %v527
      %v576 = vunpack.c.l.b16 %v528
      %v577 = vunpack.c.l.b16 %v529
      %v578 = vunpack.c.l.b16 %v530
      %v579 = vunpack.c.l.b16 %v531
      %v580 = vunpack.c.l.b16 %v532
      %v581 = vunpack.c.l.b16 %v533
      %v582 = vunpack.c.l.b16 %v534
      %v583 = vunpack.c.l.b16 %v535
      %v584 = vunpack.c.l.b16 %v536
      %v585 = vpack.c.b16 %v570, %v569
      %v586 = vpack.c.b16 %v572, %v571
      %v587 = vpack.c.b16 %v574, %v573
      %v588 = vpack.c.b16 %v576, %v575
      %v589 = vpack.c.b16 %v578, %v577
      %v590 = vpack.c.b16 %v580, %v579
      %v591 = vpack.c.b16 %v582, %v581
      %v592 = vpack.c.b16 %v584, %v583
      %v617 = vunpack.c.l.b16 %v537
      %v618 = vunpack.c.l.b16 %v538
      %v619 = vunpack.c.l.b16 %v539
      %v620 = vunpack.c.l.b16 %v540
      %v621 = vunpack.c.l.b16 %v541
      %v622 = vunpack.c.l.b16 %v542
      %v623 = vunpack.c.l.b16 %v543
      %v624 = vunpack.c.l.b16 %v544
      %v625 = vunpack.c.l.b16 %v545
      %v626 = vunpack.c.l.b16 %v546
      %v627 = vunpack.c.l.b16 %v547
      %v628 = vunpack.c.l.b16 %v548
      %v629 = vunpack.c.l.b16 %v549
      %v630 = vunpack.c.l.b16 %v550
      %v631 = vunpack.c.l.b16 %v551
      %v632 = vunpack.c.l.b16 %v552
      %v633 = vpack.c.b16 %v618, %v617
      %v634 = vpack.c.b16 %v620, %v619
      %v635 = vpack.c.b16 %v622, %v621
      %v636 = vpack.c.b16 %v624, %v623
      %v637 = vpack.c.b16 %v626, %v625
      %v638 = vpack.c.b16 %v628, %v627
      %v639 = vpack.c.b16 %v630, %v629
      %v640 = vpack.c.b16 %v632, %v631
      %649 = vmatprep.subr.bf16.mxu0 0
      %650 = vmatpush1.bf16.xpose.msra.mxu0 %v633
      %651 = vmatprep.subr.bf16.mxu0 0
      %652 = vmatpush1.bf16.xpose.msra.mxu0 %v634
      %653 = vmatprep.subr.bf16.mxu0 0
      %654 = vmatpush1.bf16.xpose.msra.mxu0 %v635
      %655 = vmatprep.subr.bf16.mxu0 0
      %656 = vmatpush1.bf16.xpose.msra.mxu0 %v636
      %657 = vmatprep.subr.bf16.mxu0 0
      %658 = vmatpush1.bf16.xpose.msra.mxu0 %v637
      %659 = vmatprep.subr.bf16.mxu0 0
      %660 = vmatpush1.bf16.xpose.msra.mxu0 %v638
      %661 = vmatprep.subr.bf16.mxu0 0
      %662 = vmatpush1.bf16.xpose.msra.mxu0 %v639
      %663 = vmatprep.subr.bf16.mxu0 0
      %664 = vmatpush1.bf16.xpose.msra.mxu0 %v640
      %665 = vmatprep.subr.bf16.mxu0 0
      %666 = vmatpush1.bf16.xpose.msra.mxu0 0
      %667 = vmatprep.subr.bf16.mxu0 0
      %668 = vmatpush1.bf16.xpose.msra.mxu0 0
      %669 = vmatprep.subr.bf16.mxu0 0
      %670 = vmatpush1.bf16.xpose.msra.mxu0 0
      %671 = vmatprep.subr.bf16.mxu0 0
      %672 = vmatpush1.bf16.xpose.msra.mxu0 0
      %673 = vmatprep.subr.bf16.mxu0 0
      %674 = vmatpush1.bf16.xpose.msra.mxu0 0
      %675 = vmatprep.subr.bf16.mxu0 0
      %676 = vmatpush1.bf16.xpose.msra.mxu0 0
      %677 = vmatprep.subr.bf16.mxu0 0
      %678 = vmatpush1.bf16.xpose.msra.mxu0 0
      %679 = vmatprep.subr.bf16.mxu0 0
      %680 = vmatpush1.bf16.xpose.msra.mxu0 0
      %681 = vmatprep.mubr.bf16.mxu0 0
      %682 = vmatmul.mubr.bf16.gmra.mrb[0].mxu0 %v585
      %v683 = vpop.f32.mrb[0].mxu0
      %v684 = vadd.f32 0.0, %v683
      %v685 = vpop.f32.mrb[0].mxu0
      %v686 = vpop.f32.mrb[0].mxu0
      %v687 = vadd.f32 0.0, %v686
      %v688 = vpop.f32.mrb[0].mxu0
      %689 = vmatprep.mubr.bf16.mxu0 0
      %690 = vmatmul.mubr.bf16.gmra.mrb[0].mxu0 %v586
      %v691 = vpop.f32.mrb[0].mxu0
      %v692 = vadd.f32 0.0, %v691
      %v693 = vpop.f32.mrb[0].mxu0
      %v694 = vpop.f32.mrb[0].mxu0
      %v695 = vadd.f32 0.0, %v694
      %v696 = vpop.f32.mrb[0].mxu0
      %697 = vmatprep.mubr.bf16.mxu0 0
      %698 = vmatmul.mubr.bf16.gmra.mrb[0].mxu0 %v587
      %v699 = vpop.f32.mrb[0].mxu0
      %v700 = vadd.f32 0.0, %v699
      %v701 = vpop.f32.mrb[0].mxu0
      %v702 = vpop.f32.mrb[0].mxu0
      %v703 = vadd.f32 0.0, %v702
      %v704 = vpop.f32.mrb[0].mxu0
      %705 = vmatprep.mubr.bf16.mxu0 0
      %706 = vmatmul.mubr.bf16.gmra.mrb[0].mxu0 %v588
      %v707 = vpop.f32.mrb[0].mxu0
      %v708 = vadd.f32 0.0, %v707
      %v709 = vpop.f32.mrb[0].mxu0
      %v710 = vpop.f32.mrb[0].mxu0
      %v711 = vadd.f32 0.0, %v710
      %v712 = vpop.f32.mrb[0].mxu0
      %713 = vmatprep.mubr.bf16.mxu0 0
      %714 = vmatmul.mubr.bf16.gmra.mrb[0].mxu0 %v589
      %v715 = vpop.f32.mrb[0].mxu0
      %v716 = vadd.f32 0.0, %v715
      %v717 = vpop.f32.mrb[0].mxu0
      %v718 = vpop.f32.mrb[0].mxu0
      %v719 = vadd.f32 0.0, %v718
      %v720 = vpop.f32.mrb[0].mxu0
      %721 = vmatprep.mubr.bf16.mxu0 0
      %722 = vmatmul.mubr.bf16.gmra.mrb[0].mxu0 %v590
      %v723 = vpop.f32.mrb[0].mxu0
      %v724 = vadd.f32 0.0, %v723
      %v725 = vpop.f32.mrb[0].mxu0
      %v726 = vpop.f32.mrb[0].mxu0
      %v727 = vadd.f32 0.0, %v726
      %v728 = vpop.f32.mrb[0].mxu0
      %729 = vmatprep.mubr.bf16.mxu0 0
      %730 = vmatmul.mubr.bf16.gmra.mrb[0].mxu0 %v591
      %v731 = vpop.f32.mrb[0].mxu0
      %v732 = vadd.f32 0.0, %v731
      %v733 = vpop.f32.mrb[0].mxu0
      %v734 = vpop.f32.mrb[0].mxu0
      %v735 = vadd.f32 0.0, %v734
      %v736 = vpop.f32.mrb[0].mxu0
      %737 = vmatprep.mubr.bf16.mxu0 0
      %738 = vmatmul.mubr.bf16.gmra.mrb[0].mxu0 %v592
      %v739 = vpop.f32.mrb[0].mxu0
      %v740 = vadd.f32 0.0, %v739
      %v741 = vpop.f32.mrb[0].mxu0
      %v742 = vpop.f32.mrb[0].mxu0
      %v743 = vadd.f32 0.0, %v742
      %v744 = vpop.f32.mrb[0].mxu0
      %745 = vdwg.mxu0
      %v746 = vmul.f32 %v684, 14.285714
      %v747 = vmul.f32 %v687, 14.285714
      %v748 = vmul.f32 %v692, 14.285714
      %v749 = vmul.f32 %v695, 14.285714
      %v750 = vmul.f32 %v700, 14.285714
      %v751 = vmul.f32 %v703, 14.285714
      %v752 = vmul.f32 %v708, 14.285714
      %v753 = vmul.f32 %v711, 14.285714
      %v754 = vmul.f32 %v716, 14.285714
      %v755 = vmul.f32 %v719, 14.285714
      %v756 = vmul.f32 %v724, 14.285714
      %v757 = vmul.f32 %v727, 14.285714
      %v758 = vmul.f32 %v732, 14.285714
      %v759 = vmul.f32 %v735, 14.285714
      %v760 = vmul.f32 %v740, 14.285714
      %v761 = vmul.f32 %v743, 14.285714
      %v762 = vld [vmem:[%s444] sm:$0x1]
      %vm763 = vcmp.gt.f32.partialorder %v762, 0.5
      %v764 = vld [vmem:[%s431] sm:$0xff]
      %v765 = vld [vmem:[%s431 + $0x8] sm:$0xff]
      %v766 = vld [vmem:[%s431 + $0x10] sm:$0xff]
      %v767 = vld [vmem:[%s431 + $0x18] sm:$0xff]
      %v768 = vld [vmem:[%s431 + $0x20] sm:$0xff]
      %v769 = vld [vmem:[%s431 + $0x28] sm:$0xff]
      %v770 = vld [vmem:[%s431 + $0x30] sm:$0xff]
      %v771 = vld [vmem:[%s431 + $0x38] sm:$0xff]
      %v772 = vld [vmem:[%s431 + $0x40] sm:$0xff]
      %v773 = vld [vmem:[%s431 + $0x48] sm:$0xff]
      %v774 = vld [vmem:[%s431 + $0x50] sm:$0xff]
      %v775 = vld [vmem:[%s431 + $0x58] sm:$0xff]
      %v776 = vld [vmem:[%s431 + $0x60] sm:$0xff]
      %v777 = vld [vmem:[%s431 + $0x68] sm:$0xff]
      %v778 = vld [vmem:[%s431 + $0x70] sm:$0xff]
      %v779 = vld [vmem:[%s431 + $0x78] sm:$0xff]
      %v780 = vld [vmem:[%s435] sm:$0x1]
      %781 = vset.pattern.permute.xlu0 0
      %782 = vperm.xlu0 %781, %v764
      %v783 = vpop.permute.xlu0 %782
      %784 = vset.pattern.permute.xlu0 0
      %785 = vperm.xlu0 %784, %v765
      %v786 = vpop.permute.xlu0 %785
      %787 = vset.pattern.permute.xlu0 0
      %788 = vperm.xlu0 %787, %v766
      %v789 = vpop.permute.xlu0 %788
      %790 = vset.pattern.permute.xlu0 0
      %791 = vperm.xlu0 %790, %v767
      %v792 = vpop.permute.xlu0 %791
      %793 = vset.pattern.permute.xlu0 0
      %794 = vperm.xlu0 %793, %v768
      %v795 = vpop.permute.xlu0 %794
      %796 = vset.pattern.permute.xlu0 0
      %797 = vperm.xlu0 %796, %v769
      %v798 = vpop.permute.xlu0 %797
      %799 = vset.pattern.permute.xlu0 0
      %800 = vperm.xlu0 %799, %v770
      %v801 = vpop.permute.xlu0 %800
      %802 = vset.pattern.permute.xlu0 0
      %803 = vperm.xlu0 %802, %v771
      %v804 = vpop.permute.xlu0 %803
      %805 = vset.pattern.permute.xlu0 0
      %806 = vperm.xlu0 %805, %v772
      %v807 = vpop.permute.xlu0 %806
      %808 = vset.pattern.permute.xlu0 0
      %809 = vperm.xlu0 %808, %v773
      %v810 = vpop.permute.xlu0 %809
      %811 = vset.pattern.permute.xlu0 0
      %812 = vperm.xlu0 %811, %v774
      %v813 = vpop.permute.xlu0 %812
      %814 = vset.pattern.permute.xlu0 0
      %815 = vperm.xlu0 %814, %v775
      %v816 = vpop.permute.xlu0 %815
      %817 = vset.pattern.permute.xlu0 0
      %818 = vperm.xlu0 %817, %v776
      %v819 = vpop.permute.xlu0 %818
      %820 = vset.pattern.permute.xlu0 0
      %821 = vperm.xlu0 %820, %v777
      %v822 = vpop.permute.xlu0 %821
      %823 = vset.pattern.permute.xlu0 0
      %824 = vperm.xlu0 %823, %v778
      %v825 = vpop.permute.xlu0 %824
      %826 = vset.pattern.permute.xlu0 0
      %827 = vperm.xlu0 %826, %v779
      %v828 = vpop.permute.xlu0 %827
      %v829 = vlaneseq
      %v830 = vshrl.u32 %v829, 7
      %v831 = vsub.s32 0, %v830
      %v832 = vrot.slane %v780, %v831
      %vm833 = vcmp.ne.s32.totalorder %v783, %v832
      %vm834 = vcmp.ne.s32.totalorder %v786, %v832
      %vm835 = vcmp.ne.s32.totalorder %v789, %v832
      %vm836 = vcmp.ne.s32.totalorder %v792, %v832
      %vm837 = vcmp.ne.s32.totalorder %v795, %v832
      %vm838 = vcmp.ne.s32.totalorder %v798, %v832
      %vm839 = vcmp.ne.s32.totalorder %v801, %v832
      %vm840 = vcmp.ne.s32.totalorder %v804, %v832
      %vm841 = vcmp.ne.s32.totalorder %v807, %v832
      %vm842 = vcmp.ne.s32.totalorder %v810, %v832
      %vm843 = vcmp.ne.s32.totalorder %v813, %v832
      %vm844 = vcmp.ne.s32.totalorder %v816, %v832
      %vm845 = vcmp.ne.s32.totalorder %v819, %v832
      %vm846 = vcmp.ne.s32.totalorder %v822, %v832
      %vm847 = vcmp.ne.s32.totalorder %v825, %v832
      %vm848 = vcmp.ne.s32.totalorder %v828, %v832
      %v849 = vsel %vm763, 1, 0
      %v850 = vlaneseq
      %v851 = vshrl.u32 %v850, 7
      %v852 = vsub.s32 0, %v851
      %v853 = vrot.slane %v849, %v852
      %vm854 = vcmp.eq.s32.totalorder %v853, 1
      %vm855 = vmand %vm833, %vm854
      %vm856 = vmand %vm834, %vm854
      %vm857 = vmand %vm835, %vm854
      %vm858 = vmand %vm836, %vm854
      %vm859 = vmand %vm837, %vm854
      %vm860 = vmand %vm838, %vm854
      %vm861 = vmand %vm839, %vm854
      %vm862 = vmand %vm840, %vm854
      %vm863 = vmand %vm841, %vm854
      %vm864 = vmand %vm842, %vm854
      %vm865 = vmand %vm843, %vm854
      %vm866 = vmand %vm844, %vm854
      %vm867 = vmand %vm845, %vm854
      %vm868 = vmand %vm846, %vm854
      %vm869 = vmand %vm847, %vm854
      %vm870 = vmand %vm848, %vm854
      %v871 = vld [vmem:[%s422] sm:$0xff]
      %v872 = vld [vmem:[%s422 + $0x8] sm:$0xff]
      %v873 = vld [vmem:[%s422 + $0x10] sm:$0xff]
      %v874 = vld [vmem:[%s422 + $0x18] sm:$0xff]
      %v875 = vld [vmem:[%s422 + $0x20] sm:$0xff]
      %v876 = vld [vmem:[%s422 + $0x28] sm:$0xff]
      %v877 = vld [vmem:[%s422 + $0x30] sm:$0xff]
      %v878 = vld [vmem:[%s422 + $0x38] sm:$0xff]
      %v879 = vld [vmem:[%s422 + $0x40] sm:$0xff]
      %v880 = vld [vmem:[%s422 + $0x48] sm:$0xff]
      %v881 = vld [vmem:[%s422 + $0x50] sm:$0xff]
      %v882 = vld [vmem:[%s422 + $0x58] sm:$0xff]
      %v883 = vld [vmem:[%s422 + $0x60] sm:$0xff]
      %v884 = vld [vmem:[%s422 + $0x68] sm:$0xff]
      %v885 = vld [vmem:[%s422 + $0x70] sm:$0xff]
      %v886 = vld [vmem:[%s422 + $0x78] sm:$0xff]
      %v887 = vld [vmem:[%s426] sm:$0x1]
      %888 = vset.pattern.permute.xlu0 0
      %889 = vperm.xlu0 %888, %v871
      %v890 = vpop.permute.xlu0 %889
      %891 = vset.pattern.permute.xlu0 0
      %892 = vperm.xlu0 %891, %v872
      %v893 = vpop.permute.xlu0 %892
      %894 = vset.pattern.permute.xlu0 0
      %895 = vperm.xlu0 %894, %v873
      %v896 = vpop.permute.xlu0 %895
      %897 = vset.pattern.permute.xlu0 0
      %898 = vperm.xlu0 %897, %v874
      %v899 = vpop.permute.xlu0 %898
      %900 = vset.pattern.permute.xlu0 0
      %901 = vperm.xlu0 %900, %v875
      %v902 = vpop.permute.xlu0 %901
      %903 = vset.pattern.permute.xlu0 0
      %904 = vperm.xlu0 %903, %v876
      %v905 = vpop.permute.xlu0 %904
      %906 = vset.pattern.permute.xlu0 0
      %907 = vperm.xlu0 %906, %v877
      %v908 = vpop.permute.xlu0 %907
      %909 = vset.pattern.permute.xlu0 0
      %910 = vperm.xlu0 %909, %v878
      %v911 = vpop.permute.xlu0 %910
      %912 = vset.pattern.permute.xlu0 0
      %913 = vperm.xlu0 %912, %v879
      %v914 = vpop.permute.xlu0 %913
      %915 = vset.pattern.permute.xlu0 0
      %916 = vperm.xlu0 %915, %v880
      %v917 = vpop.permute.xlu0 %916
      %918 = vset.pattern.permute.xlu0 0
      %919 = vperm.xlu0 %918, %v881
      %v920 = vpop.permute.xlu0 %919
      %921 = vset.pattern.permute.xlu0 0
      %922 = vperm.xlu0 %921, %v882
      %v923 = vpop.permute.xlu0 %922
      %924 = vset.pattern.permute.xlu0 0
      %925 = vperm.xlu0 %924, %v883
      %v926 = vpop.permute.xlu0 %925
      %927 = vset.pattern.permute.xlu0 0
      %928 = vperm.xlu0 %927, %v884
      %v929 = vpop.permute.xlu0 %928
      %930 = vset.pattern.permute.xlu0 0
      %931 = vperm.xlu0 %930, %v885
      %v932 = vpop.permute.xlu0 %931
      %933 = vset.pattern.permute.xlu0 0
      %934 = vperm.xlu0 %933, %v886
      %v935 = vpop.permute.xlu0 %934
      %v936 = vlaneseq
      %v937 = vshrl.u32 %v936, 7
      %v938 = vsub.s32 0, %v937
      %v939 = vrot.slane %v887, %v938
      %vm940 = vcmp.eq.s32.totalorder %v890, %v939
      %vm941 = vcmp.eq.s32.totalorder %v893, %v939
      %vm942 = vcmp.eq.s32.totalorder %v896, %v939
      %vm943 = vcmp.eq.s32.totalorder %v899, %v939
      %vm944 = vcmp.eq.s32.totalorder %v902, %v939
      %vm945 = vcmp.eq.s32.totalorder %v905, %v939
      %vm946 = vcmp.eq.s32.totalorder %v908, %v939
      %vm947 = vcmp.eq.s32.totalorder %v911, %v939
      %vm948 = vcmp.eq.s32.totalorder %v914, %v939
      %vm949 = vcmp.eq.s32.totalorder %v917, %v939
      %vm950 = vcmp.eq.s32.totalorder %v920, %v939
      %vm951 = vcmp.eq.s32.totalorder %v923, %v939
      %vm952 = vcmp.eq.s32.totalorder %v926, %v939
      %vm953 = vcmp.eq.s32.totalorder %v929, %v939
      %vm954 = vcmp.eq.s32.totalorder %v932, %v939
      %vm955 = vcmp.eq.s32.totalorder %v935, %v939
      %vm956 = vmand %vm855, %vm940
      %vm957 = vmand %vm856, %vm941
      %vm958 = vmand %vm857, %vm942
      %vm959 = vmand %vm858, %vm943
      %vm960 = vmand %vm859, %vm944
      %vm961 = vmand %vm860, %vm945
      %vm962 = vmand %vm861, %vm946
      %vm963 = vmand %vm862, %vm947
      %vm964 = vmand %vm863, %vm948
      %vm965 = vmand %vm864, %vm949
      %vm966 = vmand %vm865, %vm950
      %vm967 = vmand %vm866, %vm951
      %vm968 = vmand %vm867, %vm952
      %vm969 = vmand %vm868, %vm953
      %vm970 = vmand %vm869, %vm954
      %vm971 = vmand %vm870, %vm955
      %v972 = vsel %vm855, %v746, -1e+30
      %v973 = vsel %vm856, %v747, -1e+30
      %v974 = vsel %vm857, %v748, -1e+30
      %v975 = vsel %vm858, %v749, -1e+30
      %v976 = vsel %vm859, %v750, -1e+30
      %v977 = vsel %vm860, %v751, -1e+30
      %v978 = vsel %vm861, %v752, -1e+30
      %v979 = vsel %vm862, %v753, -1e+30
      %v980 = vsel %vm863, %v754, -1e+30
      %v981 = vsel %vm864, %v755, -1e+30
      %v982 = vsel %vm865, %v756, -1e+30
      %v983 = vsel %vm866, %v757, -1e+30
      %v984 = vsel %vm867, %v758, -1e+30
      %v985 = vsel %vm868, %v759, -1e+30
      %v986 = vsel %vm869, %v760, -1e+30
      %v987 = vsel %vm870, %v761, -1e+30
      %v988 = vld [vmem:[#allocation2] sm:$0xff]
      %v989 = vld [vmem:[#allocation2 + $0x8] sm:$0xff]
      %v990 = vld [vmem:[#allocation2 + $0x10] sm:$0xff]
      %v991 = vld [vmem:[#allocation2 + $0x18] sm:$0xff]
      %v992 = vld [vmem:[#allocation2 + $0x20] sm:$0xff]
      %v993 = vld [vmem:[#allocation2 + $0x28] sm:$0xff]
      %v994 = vld [vmem:[#allocation2 + $0x30] sm:$0xff]
      %v995 = vld [vmem:[#allocation2 + $0x38] sm:$0xff]
      %v996 = vld [vmem:[#allocation2 + $0x40] sm:$0xff]
      %v997 = vld [vmem:[#allocation2 + $0x48] sm:$0xff]
      %v998 = vld [vmem:[#allocation2 + $0x50] sm:$0xff]
      %v999 = vld [vmem:[#allocation2 + $0x58] sm:$0xff]
      %v1000 = vld [vmem:[#allocation2 + $0x60] sm:$0xff]
      %v1001 = vld [vmem:[#allocation2 + $0x68] sm:$0xff]
      %v1002 = vld [vmem:[#allocation2 + $0x70] sm:$0xff]
      %v1003 = vld [vmem:[#allocation2 + $0x78] sm:$0xff]
      %1004 = vmax.xlane.f32.xlu0 %v972
      %v1005 = vpop.xlane.xlu0 %1004
      %1006 = vmax.xlane.f32.xlu0 %v973
      %v1007 = vpop.xlane.xlu0 %1006
      %1008 = vmax.xlane.f32.xlu0 %v974
      %v1009 = vpop.xlane.xlu0 %1008
      %1010 = vmax.xlane.f32.xlu0 %v975
      %v1011 = vpop.xlane.xlu0 %1010
      %1012 = vmax.xlane.f32.xlu0 %v976
      %v1013 = vpop.xlane.xlu0 %1012
      %1014 = vmax.xlane.f32.xlu0 %v977
      %v1015 = vpop.xlane.xlu0 %1014
      %1016 = vmax.xlane.f32.xlu0 %v978
      %v1017 = vpop.xlane.xlu0 %1016
      %1018 = vmax.xlane.f32.xlu0 %v979
      %v1019 = vpop.xlane.xlu0 %1018
      %1020 = vmax.xlane.f32.xlu0 %v980
      %v1021 = vpop.xlane.xlu0 %1020
      %1022 = vmax.xlane.f32.xlu0 %v981
      %v1023 = vpop.xlane.xlu0 %1022
      %1024 = vmax.xlane.f32.xlu0 %v982
      %v1025 = vpop.xlane.xlu0 %1024
      %1026 = vmax.xlane.f32.xlu0 %v983
      %v1027 = vpop.xlane.xlu0 %1026
      %1028 = vmax.xlane.f32.xlu0 %v984
      %v1029 = vpop.xlane.xlu0 %1028
      %1030 = vmax.xlane.f32.xlu0 %v985
      %v1031 = vpop.xlane.xlu0 %1030
      %1032 = vmax.xlane.f32.xlu0 %v986
      %v1033 = vpop.xlane.xlu0 %1032
      %1034 = vmax.xlane.f32.xlu0 %v987
      %v1035 = vpop.xlane.xlu0 %1034
      %v1036 = vmax.f32 %v988, %v1005
      %v1037 = vmax.f32 %v989, %v1007
      %v1038 = vmax.f32 %v990, %v1009
      %v1039 = vmax.f32 %v991, %v1011
      %v1040 = vmax.f32 %v992, %v1013
      %v1041 = vmax.f32 %v993, %v1015
      %v1042 = vmax.f32 %v994, %v1017
      %v1043 = vmax.f32 %v995, %v1019
      %v1044 = vmax.f32 %v996, %v1021
      %v1045 = vmax.f32 %v997, %v1023
      %v1046 = vmax.f32 %v998, %v1025
      %v1047 = vmax.f32 %v999, %v1027
      %v1048 = vmax.f32 %v1000, %v1029
      %v1049 = vmax.f32 %v1001, %v1031
      %v1050 = vmax.f32 %v1002, %v1033
      %v1051 = vmax.f32 %v1003, %v1035
      %v1052 = vsub.f32 %v988, %v1036
      %v1053 = vsub.f32 %v989, %v1037
      %v1054 = vsub.f32 %v990, %v1038
      %v1055 = vsub.f32 %v991, %v1039
      %v1056 = vsub.f32 %v992, %v1040
      %v1057 = vsub.f32 %v993, %v1041
      %v1058 = vsub.f32 %v994, %v1042
      %v1059 = vsub.f32 %v995, %v1043
      %v1060 = vsub.f32 %v996, %v1044
      %v1061 = vsub.f32 %v997, %v1045
      %v1062 = vsub.f32 %v998, %v1046
      %v1063 = vsub.f32 %v999, %v1047
      %v1064 = vsub.f32 %v1000, %v1048
      %v1065 = vsub.f32 %v1001, %v1049
      %v1066 = vsub.f32 %v1002, %v1050
      %v1067 = vsub.f32 %v1003, %v1051
      %v1068 = vmul.f32 %v1052, 1.442695
      %v1069 = vpow.pop %v1068
      %v1070 = vmul.f32 %v1053, 1.442695
      %v1071 = vpow.pop %v1070
      %v1072 = vmul.f32 %v1054, 1.442695
      %v1073 = vpow.pop %v1072
      %v1074 = vmul.f32 %v1055, 1.442695
      %v1075 = vpow.pop %v1074
      %v1076 = vmul.f32 %v1056, 1.442695
      %v1077 = vpow.pop %v1076
      %v1078 = vmul.f32 %v1057, 1.442695
      %v1079 = vpow.pop %v1078
      %v1080 = vmul.f32 %v1058, 1.442695
      %v1081 = vpow.pop %v1080
      %v1082 = vmul.f32 %v1059, 1.442695
      %v1083 = vpow.pop %v1082
      %v1084 = vmul.f32 %v1060, 1.442695
      %v1085 = vpow.pop %v1084
      %v1086 = vmul.f32 %v1061, 1.442695
      %v1087 = vpow.pop %v1086
      %v1088 = vmul.f32 %v1062, 1.442695
      %v1089 = vpow.pop %v1088
      %v1090 = vmul.f32 %v1063, 1.442695
      %v1091 = vpow.pop %v1090
      %v1092 = vmul.f32 %v1064, 1.442695
      %v1093 = vpow.pop %v1092
      %v1094 = vmul.f32 %v1065, 1.442695
      %v1095 = vpow.pop %v1094
      %v1096 = vmul.f32 %v1066, 1.442695
      %v1097 = vpow.pop %v1096
      %v1098 = vmul.f32 %v1067, 1.442695
      %v1099 = vpow.pop %v1098
      %1101 = vset.pattern.permute.xlu0 0
      %1102 = vperm.xlu0 %1101, %v1036
      %v1103 = vpop.permute.xlu0 %1102
      %1106 = vset.pattern.permute.xlu0 0
      %1107 = vperm.xlu0 %1106, %v1037
      %v1108 = vpop.permute.xlu0 %1107
      %1111 = vset.pattern.permute.xlu0 0
      %1112 = vperm.xlu0 %1111, %v1038
      %v1113 = vpop.permute.xlu0 %1112
      %1116 = vset.pattern.permute.xlu0 0
      %1117 = vperm.xlu0 %1116, %v1039
      %v1118 = vpop.permute.xlu0 %1117
      %1121 = vset.pattern.permute.xlu0 0
      %1122 = vperm.xlu0 %1121, %v1040
      %v1123 = vpop.permute.xlu0 %1122
      %1126 = vset.pattern.permute.xlu0 0
      %1127 = vperm.xlu0 %1126, %v1041
      %v1128 = vpop.permute.xlu0 %1127
      %1131 = vset.pattern.permute.xlu0 0
      %1132 = vperm.xlu0 %1131, %v1042
      %v1133 = vpop.permute.xlu0 %1132
      %1136 = vset.pattern.permute.xlu0 0
      %1137 = vperm.xlu0 %1136, %v1043
      %v1138 = vpop.permute.xlu0 %1137
      %1141 = vset.pattern.permute.xlu0 0
      %1142 = vperm.xlu0 %1141, %v1044
      %v1143 = vpop.permute.xlu0 %1142
      %1146 = vset.pattern.permute.xlu0 0
      %1147 = vperm.xlu0 %1146, %v1045
      %v1148 = vpop.permute.xlu0 %1147
      %1151 = vset.pattern.permute.xlu0 0
      %1152 = vperm.xlu0 %1151, %v1046
      %v1153 = vpop.permute.xlu0 %1152
      %1156 = vset.pattern.permute.xlu0 0
      %1157 = vperm.xlu0 %1156, %v1047
      %v1158 = vpop.permute.xlu0 %1157
      %1161 = vset.pattern.permute.xlu0 0
      %1162 = vperm.xlu0 %1161, %v1048
      %v1163 = vpop.permute.xlu0 %1162
      %1166 = vset.pattern.permute.xlu0 0
      %1167 = vperm.xlu0 %1166, %v1049
      %v1168 = vpop.permute.xlu0 %1167
      %1171 = vset.pattern.permute.xlu0 0
      %1172 = vperm.xlu0 %1171, %v1050
      %v1173 = vpop.permute.xlu0 %1172
      %1176 = vset.pattern.permute.xlu0 0
      %1177 = vperm.xlu0 %1176, %v1051
      %v1178 = vpop.permute.xlu0 %1177
      %v1180 = vsub.f32 %v972, %v1103
      %v1181 = vsub.f32 %v973, %v1108
      %v1182 = vsub.f32 %v974, %v1113
      %v1183 = vsub.f32 %v975, %v1118
      %v1184 = vsub.f32 %v976, %v1123
      %v1185 = vsub.f32 %v977, %v1128
      %v1186 = vsub.f32 %v978, %v1133
      %v1187 = vsub.f32 %v979, %v1138
      %v1188 = vsub.f32 %v980, %v1143
      %v1189 = vsub.f32 %v981, %v1148
      %v1190 = vsub.f32 %v982, %v1153
      %v1191 = vsub.f32 %v983, %v1158
      %v1192 = vsub.f32 %v984, %v1163
      %v1193 = vsub.f32 %v985, %v1168
      %v1194 = vsub.f32 %v986, %v1173
      %v1195 = vsub.f32 %v987, %v1178
      %v1196 = vmul.f32 %v1180, 1.442695
      %v1197 = vpow.pop %v1196
      %v1198 = vmul.f32 %v1181, 1.442695
      %v1199 = vpow.pop %v1198
      %v1200 = vmul.f32 %v1182, 1.442695
      %v1201 = vpow.pop %v1200
      %v1202 = vmul.f32 %v1183, 1.442695
      %v1203 = vpow.pop %v1202
      %v1204 = vmul.f32 %v1184, 1.442695
      %v1205 = vpow.pop %v1204
      %v1206 = vmul.f32 %v1185, 1.442695
      %v1207 = vpow.pop %v1206
      %v1208 = vmul.f32 %v1186, 1.442695
      %v1209 = vpow.pop %v1208
      %v1210 = vmul.f32 %v1187, 1.442695
      %v1211 = vpow.pop %v1210
      %v1212 = vmul.f32 %v1188, 1.442695
      %v1213 = vpow.pop %v1212
      %v1214 = vmul.f32 %v1189, 1.442695
      %v1215 = vpow.pop %v1214
      %v1216 = vmul.f32 %v1190, 1.442695
      %v1217 = vpow.pop %v1216
      %v1218 = vmul.f32 %v1191, 1.442695
      %v1219 = vpow.pop %v1218
      %v1220 = vmul.f32 %v1192, 1.442695
      %v1221 = vpow.pop %v1220
      %v1222 = vmul.f32 %v1193, 1.442695
      %v1223 = vpow.pop %v1222
      %v1224 = vmul.f32 %v1194, 1.442695
      %v1225 = vpow.pop %v1224
      %v1226 = vmul.f32 %v1195, 1.442695
      %v1227 = vpow.pop %v1226
      %v1228 = vld [vmem:[#allocation3] sm:$0xff]
      %v1229 = vld [vmem:[#allocation3 + $0x8] sm:$0xff]
      %v1230 = vld [vmem:[#allocation3 + $0x10] sm:$0xff]
      %v1231 = vld [vmem:[#allocation3 + $0x18] sm:$0xff]
      %v1232 = vld [vmem:[#allocation3 + $0x20] sm:$0xff]
      %v1233 = vld [vmem:[#allocation3 + $0x28] sm:$0xff]
      %v1234 = vld [vmem:[#allocation3 + $0x30] sm:$0xff]
      %v1235 = vld [vmem:[#allocation3 + $0x38] sm:$0xff]
      %v1236 = vld [vmem:[#allocation3 + $0x40] sm:$0xff]
      %v1237 = vld [vmem:[#allocation3 + $0x48] sm:$0xff]
      %v1238 = vld [vmem:[#allocation3 + $0x50] sm:$0xff]
      %v1239 = vld [vmem:[#allocation3 + $0x58] sm:$0xff]
      %v1240 = vld [vmem:[#allocation3 + $0x60] sm:$0xff]
      %v1241 = vld [vmem:[#allocation3 + $0x68] sm:$0xff]
      %v1242 = vld [vmem:[#allocation3 + $0x70] sm:$0xff]
      %v1243 = vld [vmem:[#allocation3 + $0x78] sm:$0xff]
      %v1244 = vmul.f32 %v1069, %v1228
      %v1245 = vmul.f32 %v1071, %v1229
      %v1246 = vmul.f32 %v1073, %v1230
      %v1247 = vmul.f32 %v1075, %v1231
      %v1248 = vmul.f32 %v1077, %v1232
      %v1249 = vmul.f32 %v1079, %v1233
      %v1250 = vmul.f32 %v1081, %v1234
      %v1251 = vmul.f32 %v1083, %v1235
      %v1252 = vmul.f32 %v1085, %v1236
      %v1253 = vmul.f32 %v1087, %v1237
      %v1254 = vmul.f32 %v1089, %v1238
      %v1255 = vmul.f32 %v1091, %v1239
      %v1256 = vmul.f32 %v1093, %v1240
      %v1257 = vmul.f32 %v1095, %v1241
      %v1258 = vmul.f32 %v1097, %v1242
      %v1259 = vmul.f32 %v1099, %v1243
      %1260 = vadd.xlane.f32.xlu0 %v1197
      %v1261 = vpop.xlane.xlu0 %1260
      %1262 = vadd.xlane.f32.xlu0 %v1199
      %v1263 = vpop.xlane.xlu0 %1262
      %1264 = vadd.xlane.f32.xlu0 %v1201
      %v1265 = vpop.xlane.xlu0 %1264
      %1266 = vadd.xlane.f32.xlu0 %v1203
      %v1267 = vpop.xlane.xlu0 %1266
      %1268 = vadd.xlane.f32.xlu0 %v1205
      %v1269 = vpop.xlane.xlu0 %1268
      %1270 = vadd.xlane.f32.xlu0 %v1207
      %v1271 = vpop.xlane.xlu0 %1270
      %1272 = vadd.xlane.f32.xlu0 %v1209
      %v1273 = vpop.xlane.xlu0 %1272
      %1274 = vadd.xlane.f32.xlu0 %v1211
      %v1275 = vpop.xlane.xlu0 %1274
      %1276 = vadd.xlane.f32.xlu0 %v1213
      %v1277 = vpop.xlane.xlu0 %1276
      %1278 = vadd.xlane.f32.xlu0 %v1215
      %v1279 = vpop.xlane.xlu0 %1278
      %1280 = vadd.xlane.f32.xlu0 %v1217
      %v1281 = vpop.xlane.xlu0 %1280
      %1282 = vadd.xlane.f32.xlu0 %v1219
      %v1283 = vpop.xlane.xlu0 %1282
      %1284 = vadd.xlane.f32.xlu0 %v1221
      %v1285 = vpop.xlane.xlu0 %1284
      %1286 = vadd.xlane.f32.xlu0 %v1223
      %v1287 = vpop.xlane.xlu0 %1286
      %1288 = vadd.xlane.f32.xlu0 %v1225
      %v1289 = vpop.xlane.xlu0 %1288
      %1290 = vadd.xlane.f32.xlu0 %v1227
      %v1291 = vpop.xlane.xlu0 %1290
      %v1292 = vadd.f32 %v1244, %v1261
      %v1293 = vadd.f32 %v1245, %v1263
      %v1294 = vadd.f32 %v1246, %v1265
      %v1295 = vadd.f32 %v1247, %v1267
      %v1296 = vadd.f32 %v1248, %v1269
      %v1297 = vadd.f32 %v1249, %v1271
      %v1298 = vadd.f32 %v1250, %v1273
      %v1299 = vadd.f32 %v1251, %v1275
      %v1300 = vadd.f32 %v1252, %v1277
      %v1301 = vadd.f32 %v1253, %v1279
      %v1302 = vadd.f32 %v1254, %v1281
      %v1303 = vadd.f32 %v1255, %v1283
      %v1304 = vadd.f32 %v1256, %v1285
      %v1305 = vadd.f32 %v1257, %v1287
      %v1306 = vadd.f32 %v1258, %v1289
      %v1307 = vadd.f32 %v1259, %v1291
      %vm1308 = vcmask 7168
      %1309 = vst.msk [vmem:[#allocation3] sm:$0xff] %vm1308, %v1292
      %1310 = vst.msk [vmem:[#allocation3 + $0x8] sm:$0xff] %vm1308, %v1293
      %1311 = vst.msk [vmem:[#allocation3 + $0x10] sm:$0xff] %vm1308, %v1294
      %1312 = vst.msk [vmem:[#allocation3 + $0x18] sm:$0xff] %vm1308, %v1295
      %1313 = vst.msk [vmem:[#allocation3 + $0x20] sm:$0xff] %vm1308, %v1296
      %1314 = vst.msk [vmem:[#allocation3 + $0x28] sm:$0xff] %vm1308, %v1297
      %1315 = vst.msk [vmem:[#allocation3 + $0x30] sm:$0xff] %vm1308, %v1298
      %1316 = vst.msk [vmem:[#allocation3 + $0x38] sm:$0xff] %vm1308, %v1299
      %1317 = vst.msk [vmem:[#allocation3 + $0x40] sm:$0xff] %vm1308, %v1300
      %1318 = vst.msk [vmem:[#allocation3 + $0x48] sm:$0xff] %vm1308, %v1301
      %1319 = vst.msk [vmem:[#allocation3 + $0x50] sm:$0xff] %vm1308, %v1302
      %1320 = vst.msk [vmem:[#allocation3 + $0x58] sm:$0xff] %vm1308, %v1303
      %1321 = vst.msk [vmem:[#allocation3 + $0x60] sm:$0xff] %vm1308, %v1304
      %1322 = vst.msk [vmem:[#allocation3 + $0x68] sm:$0xff] %vm1308, %v1305
      %1323 = vst.msk [vmem:[#allocation3 + $0x70] sm:$0xff] %vm1308, %v1306
      %1324 = vst.msk [vmem:[#allocation3 + $0x78] sm:$0xff] %vm1308, %v1307
      %1325 = vst.msk [vmem:[#allocation2] sm:$0xff] %vm1308, %v1036
      %1326 = vst.msk [vmem:[#allocation2 + $0x8] sm:$0xff] %vm1308, %v1037
      %1327 = vst.msk [vmem:[#allocation2 + $0x10] sm:$0xff] %vm1308, %v1038
      %1328 = vst.msk [vmem:[#allocation2 + $0x18] sm:$0xff] %vm1308, %v1039
      %1329 = vst.msk [vmem:[#allocation2 + $0x20] sm:$0xff] %vm1308, %v1040
      %1330 = vst.msk [vmem:[#allocation2 + $0x28] sm:$0xff] %vm1308, %v1041
      %1331 = vst.msk [vmem:[#allocation2 + $0x30] sm:$0xff] %vm1308, %v1042
      %1332 = vst.msk [vmem:[#allocation2 + $0x38] sm:$0xff] %vm1308, %v1043
      %1333 = vst.msk [vmem:[#allocation2 + $0x40] sm:$0xff] %vm1308, %v1044
      %1334 = vst.msk [vmem:[#allocation2 + $0x48] sm:$0xff] %vm1308, %v1045
      %1335 = vst.msk [vmem:[#allocation2 + $0x50] sm:$0xff] %vm1308, %v1046
      %1336 = vst.msk [vmem:[#allocation2 + $0x58] sm:$0xff] %vm1308, %v1047
      %1337 = vst.msk [vmem:[#allocation2 + $0x60] sm:$0xff] %vm1308, %v1048
      %1338 = vst.msk [vmem:[#allocation2 + $0x68] sm:$0xff] %vm1308, %v1049
      %1339 = vst.msk [vmem:[#allocation2 + $0x70] sm:$0xff] %vm1308, %v1050
      %1340 = vst.msk [vmem:[#allocation2 + $0x78] sm:$0xff] %vm1308, %v1051
      %v1341 = vsel %vm956, 1, 0
      %v1342 = vsel %vm957, 1, 0
      %v1343 = vsel %vm958, 1, 0
      %v1344 = vsel %vm959, 1, 0
      %v1345 = vsel %vm960, 1, 0
      %v1346 = vsel %vm961, 1, 0
      %v1347 = vsel %vm962, 1, 0
      %v1348 = vsel %vm963, 1, 0
      %v1349 = vsel %vm964, 1, 0
      %v1350 = vsel %vm965, 1, 0
      %v1351 = vsel %vm966, 1, 0
      %v1352 = vsel %vm967, 1, 0
      %v1353 = vsel %vm968, 1, 0
      %v1354 = vsel %vm969, 1, 0
      %v1355 = vsel %vm970, 1, 0
      %v1356 = vsel %vm971, 1, 0
      %v1357 = vcvt.s32.f32 %v1341
      %v1358 = vcvt.s32.f32 %v1342
      %v1359 = vcvt.s32.f32 %v1343
      %v1360 = vcvt.s32.f32 %v1344
      %v1361 = vcvt.s32.f32 %v1345
      %v1362 = vcvt.s32.f32 %v1346
      %v1363 = vcvt.s32.f32 %v1347
      %v1364 = vcvt.s32.f32 %v1348
      %v1365 = vcvt.s32.f32 %v1349
      %v1366 = vcvt.s32.f32 %v1350
      %v1367 = vcvt.s32.f32 %v1351
      %v1368 = vcvt.s32.f32 %v1352
      %v1369 = vcvt.s32.f32 %v1353
      %v1370 = vcvt.s32.f32 %v1354
      %v1371 = vcvt.s32.f32 %v1355
      %v1372 = vcvt.s32.f32 %v1356
      %v1373 = vld [vmem:[#allocation4] sm:$0xff]
      %v1374 = vld [vmem:[#allocation4 + $0x8] sm:$0xff]
      %v1375 = vld [vmem:[#allocation4 + $0x10] sm:$0xff]
      %v1376 = vld [vmem:[#allocation4 + $0x18] sm:$0xff]
      %v1377 = vld [vmem:[#allocation4 + $0x20] sm:$0xff]
      %v1378 = vld [vmem:[#allocation4 + $0x28] sm:$0xff]
      %v1379 = vld [vmem:[#allocation4 + $0x30] sm:$0xff]
      %v1380 = vld [vmem:[#allocation4 + $0x38] sm:$0xff]
      %v1381 = vld [vmem:[#allocation4 + $0x40] sm:$0xff]
      %v1382 = vld [vmem:[#allocation4 + $0x48] sm:$0xff]
      %v1383 = vld [vmem:[#allocation4 + $0x50] sm:$0xff]
      %v1384 = vld [vmem:[#allocation4 + $0x58] sm:$0xff]
      %v1385 = vld [vmem:[#allocation4 + $0x60] sm:$0xff]
      %v1386 = vld [vmem:[#allocation4 + $0x68] sm:$0xff]
      %v1387 = vld [vmem:[#allocation4 + $0x70] sm:$0xff]
      %v1388 = vld [vmem:[#allocation4 + $0x78] sm:$0xff]
      %v1389 = vmul.f32 %v1357, %v746
      %v1390 = vmul.f32 %v1358, %v747
      %v1391 = vmul.f32 %v1359, %v748
      %v1392 = vmul.f32 %v1360, %v749
      %v1393 = vmul.f32 %v1361, %v750
      %v1394 = vmul.f32 %v1362, %v751
      %v1395 = vmul.f32 %v1363, %v752
      %v1396 = vmul.f32 %v1364, %v753
      %v1397 = vmul.f32 %v1365, %v754
      %v1398 = vmul.f32 %v1366, %v755
      %v1399 = vmul.f32 %v1367, %v756
      %v1400 = vmul.f32 %v1368, %v757
      %v1401 = vmul.f32 %v1369, %v758
      %v1402 = vmul.f32 %v1370, %v759
      %v1403 = vmul.f32 %v1371, %v760
      %v1404 = vmul.f32 %v1372, %v761
      %1405 = vadd.xlane.f32.xlu0 %v1389
      %v1406 = vpop.xlane.xlu0 %1405
      %1407 = vadd.xlane.f32.xlu0 %v1390
      %v1408 = vpop.xlane.xlu0 %1407
      %1409 = vadd.xlane.f32.xlu0 %v1391
      %v1410 = vpop.xlane.xlu0 %1409
      %1411 = vadd.xlane.f32.xlu0 %v1392
      %v1412 = vpop.xlane.xlu0 %1411
      %1413 = vadd.xlane.f32.xlu0 %v1393
      %v1414 = vpop.xlane.xlu0 %1413
      %1415 = vadd.xlane.f32.xlu0 %v1394
      %v1416 = vpop.xlane.xlu0 %1415
      %1417 = vadd.xlane.f32.xlu0 %v1395
      %v1418 = vpop.xlane.xlu0 %1417
      %1419 = vadd.xlane.f32.xlu0 %v1396
      %v1420 = vpop.xlane.xlu0 %1419
      %1421 = vadd.xlane.f32.xlu0 %v1397
      %v1422 = vpop.xlane.xlu0 %1421
      %1423 = vadd.xlane.f32.xlu0 %v1398
      %v1424 = vpop.xlane.xlu0 %1423
      %1425 = vadd.xlane.f32.xlu0 %v1399
      %v1426 = vpop.xlane.xlu0 %1425
      %1427 = vadd.xlane.f32.xlu0 %v1400
      %v1428 = vpop.xlane.xlu0 %1427
      %1429 = vadd.xlane.f32.xlu0 %v1401
      %v1430 = vpop.xlane.xlu0 %1429
      %1431 = vadd.xlane.f32.xlu0 %v1402
      %v1432 = vpop.xlane.xlu0 %1431
      %1433 = vadd.xlane.f32.xlu0 %v1403
      %v1434 = vpop.xlane.xlu0 %1433
      %1435 = vadd.xlane.f32.xlu0 %v1404
      %v1436 = vpop.xlane.xlu0 %1435
      %v1437 = vadd.f32 %v1373, %v1406
      %v1438 = vadd.f32 %v1374, %v1408
      %v1439 = vadd.f32 %v1375, %v1410
      %v1440 = vadd.f32 %v1376, %v1412
      %v1441 = vadd.f32 %v1377, %v1414
      %v1442 = vadd.f32 %v1378, %v1416
      %v1443 = vadd.f32 %v1379, %v1418
      %v1444 = vadd.f32 %v1380, %v1420
      %v1445 = vadd.f32 %v1381, %v1422
      %v1446 = vadd.f32 %v1382, %v1424
      %v1447 = vadd.f32 %v1383, %v1426
      %v1448 = vadd.f32 %v1384, %v1428
      %v1449 = vadd.f32 %v1385, %v1430
      %v1450 = vadd.f32 %v1386, %v1432
      %v1451 = vadd.f32 %v1387, %v1434
      %v1452 = vadd.f32 %v1388, %v1436
      %1453 = vst.msk [vmem:[#allocation4] sm:$0xff] %vm1308, %v1437
      %1454 = vst.msk [vmem:[#allocation4 + $0x8] sm:$0xff] %vm1308, %v1438
      %1455 = vst.msk [vmem:[#allocation4 + $0x10] sm:$0xff] %vm1308, %v1439
      %1456 = vst.msk [vmem:[#allocation4 + $0x18] sm:$0xff] %vm1308, %v1440
      %1457 = vst.msk [vmem:[#allocation4 + $0x20] sm:$0xff] %vm1308, %v1441
      %1458 = vst.msk [vmem:[#allocation4 + $0x28] sm:$0xff] %vm1308, %v1442
      %1459 = vst.msk [vmem:[#allocation4 + $0x30] sm:$0xff] %vm1308, %v1443
      %1460 = vst.msk [vmem:[#allocation4 + $0x38] sm:$0xff] %vm1308, %v1444
      %1461 = vst.msk [vmem:[#allocation4 + $0x40] sm:$0xff] %vm1308, %v1445
      %1462 = vst.msk [vmem:[#allocation4 + $0x48] sm:$0xff] %vm1308, %v1446
      %1463 = vst.msk [vmem:[#allocation4 + $0x50] sm:$0xff] %vm1308, %v1447
      %1464 = vst.msk [vmem:[#allocation4 + $0x58] sm:$0xff] %vm1308, %v1448
      %1465 = vst.msk [vmem:[#allocation4 + $0x60] sm:$0xff] %vm1308, %v1449
      %1466 = vst.msk [vmem:[#allocation4 + $0x68] sm:$0xff] %vm1308, %v1450
      %1467 = vst.msk [vmem:[#allocation4 + $0x70] sm:$0xff] %vm1308, %v1451
      %1468 = vst.msk [vmem:[#allocation4 + $0x78] sm:$0xff] %vm1308, %v1452
      %v1469 = vld [vmem:[#allocation5] sm:$0xff]
      %v1470 = vld [vmem:[#allocation5 + $0x8] sm:$0xff]
      %v1471 = vld [vmem:[#allocation5 + $0x10] sm:$0xff]
      %v1472 = vld [vmem:[#allocation5 + $0x18] sm:$0xff]
      %v1473 = vld [vmem:[#allocation5 + $0x20] sm:$0xff]
      %v1474 = vld [vmem:[#allocation5 + $0x28] sm:$0xff]
      %v1475 = vld [vmem:[#allocation5 + $0x30] sm:$0xff]
      %v1476 = vld [vmem:[#allocation5 + $0x38] sm:$0xff]
      %v1477 = vld [vmem:[#allocation5 + $0x40] sm:$0xff]
      %v1478 = vld [vmem:[#allocation5 + $0x48] sm:$0xff]
      %v1479 = vld [vmem:[#allocation5 + $0x50] sm:$0xff]
      %v1480 = vld [vmem:[#allocation5 + $0x58] sm:$0xff]
      %v1481 = vld [vmem:[#allocation5 + $0x60] sm:$0xff]
      %v1482 = vld [vmem:[#allocation5 + $0x68] sm:$0xff]
      %v1483 = vld [vmem:[#allocation5 + $0x70] sm:$0xff]
      %v1484 = vld [vmem:[#allocation5 + $0x78] sm:$0xff]
      %1485 = vadd.xlane.f32.xlu0 %v1357
      %v1486 = vpop.xlane.xlu0 %1485
      %1487 = vadd.xlane.f32.xlu0 %v1358
      %v1488 = vpop.xlane.xlu0 %1487
      %1489 = vadd.xlane.f32.xlu0 %v1359
      %v1490 = vpop.xlane.xlu0 %1489
      %1491 = vadd.xlane.f32.xlu0 %v1360
      %v1492 = vpop.xlane.xlu0 %1491
      %1493 = vadd.xlane.f32.xlu0 %v1361
      %v1494 = vpop.xlane.xlu0 %1493
      %1495 = vadd.xlane.f32.xlu0 %v1362
      %v1496 = vpop.xlane.xlu0 %1495
      %1497 = vadd.xlane.f32.xlu0 %v1363
      %v1498 = vpop.xlane.xlu0 %1497
      %1499 = vadd.xlane.f32.xlu0 %v1364
      %v1500 = vpop.xlane.xlu0 %1499
      %1501 = vadd.xlane.f32.xlu0 %v1365
      %v1502 = vpop.xlane.xlu0 %1501
      %1503 = vadd.xlane.f32.xlu0 %v1366
      %v1504 = vpop.xlane.xlu0 %1503
      %1505 = vadd.xlane.f32.xlu0 %v1367
      %v1506 = vpop.xlane.xlu0 %1505
      %1507 = vadd.xlane.f32.xlu0 %v1368
      %v1508 = vpop.xlane.xlu0 %1507
      %1509 = vadd.xlane.f32.xlu0 %v1369
      %v1510 = vpop.xlane.xlu0 %1509
      %1511 = vadd.xlane.f32.xlu0 %v1370
      %v1512 = vpop.xlane.xlu0 %1511
      %1513 = vadd.xlane.f32.xlu0 %v1371
      %v1514 = vpop.xlane.xlu0 %1513
      %1515 = vadd.xlane.f32.xlu0 %v1372
      %v1516 = vpop.xlane.xlu0 %1515
      %v1517 = vadd.f32 %v1469, %v1486
      %v1518 = vadd.f32 %v1470, %v1488
      %v1519 = vadd.f32 %v1471, %v1490
      %v1520 = vadd.f32 %v1472, %v1492
      %v1521 = vadd.f32 %v1473, %v1494
      %v1522 = vadd.f32 %v1474, %v1496
      %v1523 = vadd.f32 %v1475, %v1498
      %v1524 = vadd.f32 %v1476, %v1500
      %v1525 = vadd.f32 %v1477, %v1502
      %v1526 = vadd.f32 %v1478, %v1504
      %v1527 = vadd.f32 %v1479, %v1506
      %v1528 = vadd.f32 %v1480, %v1508
      %v1529 = vadd.f32 %v1481, %v1510
      %v1530 = vadd.f32 %v1482, %v1512
      %v1531 = vadd.f32 %v1483, %v1514
      %v1532 = vadd.f32 %v1484, %v1516
      %1533 = vst.msk [vmem:[#allocation5] sm:$0xff] %vm1308, %v1517
      %1534 = vst.msk [vmem:[#allocation5 + $0x8] sm:$0xff] %vm1308, %v1518
      %1535 = vst.msk [vmem:[#allocation5 + $0x10] sm:$0xff] %vm1308, %v1519
      %1536 = vst.msk [vmem:[#allocation5 + $0x18] sm:$0xff] %vm1308, %v1520
      %1537 = vst.msk [vmem:[#allocation5 + $0x20] sm:$0xff] %vm1308, %v1521
      %1538 = vst.msk [vmem:[#allocation5 + $0x28] sm:$0xff] %vm1308, %v1522
      %1539 = vst.msk [vmem:[#allocation5 + $0x30] sm:$0xff] %vm1308, %v1523
      %1540 = vst.msk [vmem:[#allocation5 + $0x38] sm:$0xff] %vm1308, %v1524
      %1541 = vst.msk [vmem:[#allocation5 + $0x40] sm:$0xff] %vm1308, %v1525
      %1542 = vst.msk [vmem:[#allocation5 + $0x48] sm:$0xff] %vm1308, %v1526
      %1543 = vst.msk [vmem:[#allocation5 + $0x50] sm:$0xff] %vm1308, %v1527
      %1544 = vst.msk [vmem:[#allocation5 + $0x58] sm:$0xff] %vm1308, %v1528
      %1545 = vst.msk [vmem:[#allocation5 + $0x60] sm:$0xff] %vm1308, %v1529
      %1546 = vst.msk [vmem:[#allocation5 + $0x68] sm:$0xff] %vm1308, %v1530
      %1547 = vst.msk [vmem:[#allocation5 + $0x70] sm:$0xff] %vm1308, %v1531
      %1548 = vst.msk [vmem:[#allocation5 + $0x78] sm:$0xff] %vm1308, %v1532
      %p1549 = scmp.eq.s32.totalorder %s24, 1
      // Predicated region
      $region57: #{joint2joint_loss.1} parent=51 // pred_check
        %p1550 = pneg %p1549
      $region58: #{joint2joint_loss.1} parent=51 // pred_check_branch
        %1552 = sbr.rel (%p1550) target = $region60
      $region59: #{joint2joint_loss.1} parent=51 // pred_region
        %v1553 = vld [vmem:[#allocation3] sm:$0xff]
        %v1554 = vld [vmem:[#allocation3 + $0x8] sm:$0xff]
        %v1555 = vld [vmem:[#allocation3 + $0x10] sm:$0xff]
        %v1556 = vld [vmem:[#allocation3 + $0x18] sm:$0xff]
        %v1557 = vld [vmem:[#allocation3 + $0x20] sm:$0xff]
        %v1558 = vld [vmem:[#allocation3 + $0x28] sm:$0xff]
        %v1559 = vld [vmem:[#allocation3 + $0x30] sm:$0xff]
        %v1560 = vld [vmem:[#allocation3 + $0x38] sm:$0xff]
        %v1561 = vld [vmem:[#allocation3 + $0x40] sm:$0xff]
        %v1562 = vld [vmem:[#allocation3 + $0x48] sm:$0xff]
        %v1563 = vld [vmem:[#allocation3 + $0x50] sm:$0xff]
        %v1564 = vld [vmem:[#allocation3 + $0x58] sm:$0xff]
        %v1565 = vld [vmem:[#allocation3 + $0x60] sm:$0xff]
        %v1566 = vld [vmem:[#allocation3 + $0x68] sm:$0xff]
        %v1567 = vld [vmem:[#allocation3 + $0x70] sm:$0xff]
        %v1568 = vld [vmem:[#allocation3 + $0x78] sm:$0xff]
        %v1569 = vmax.f32 %v1553, 1e-30
        %v1570 = vmax.f32 %v1554, 1e-30
        %v1571 = vmax.f32 %v1555, 1e-30
        %v1572 = vmax.f32 %v1556, 1e-30
        %v1573 = vmax.f32 %v1557, 1e-30
        %v1574 = vmax.f32 %v1558, 1e-30
        %v1575 = vmax.f32 %v1559, 1e-30
        %v1576 = vmax.f32 %v1560, 1e-30
        %v1577 = vmax.f32 %v1561, 1e-30
        %v1578 = vmax.f32 %v1562, 1e-30
        %v1579 = vmax.f32 %v1563, 1e-30
        %v1580 = vmax.f32 %v1564, 1e-30
        %v1581 = vmax.f32 %v1565, 1e-30
        %v1582 = vmax.f32 %v1566, 1e-30
        %v1583 = vmax.f32 %v1567, 1e-30
        %v1584 = vmax.f32 %v1568, 1e-30
        %v1585 = vlog2.pop %v1569
        %v1586 = vmul.f32 %v1585, 0.6931472
        %v1587 = vlog2.pop %v1570
        %v1588 = vmul.f32 %v1587, 0.6931472
        %v1589 = vlog2.pop %v1571
        %v1590 = vmul.f32 %v1589, 0.6931472
        %v1591 = vlog2.pop %v1572
        %v1592 = vmul.f32 %v1591, 0.6931472
        %v1593 = vlog2.pop %v1573
        %v1594 = vmul.f32 %v1593, 0.6931472
        %v1595 = vlog2.pop %v1574
        %v1596 = vmul.f32 %v1595, 0.6931472
        %v1597 = vlog2.pop %v1575
        %v1598 = vmul.f32 %v1597, 0.6931472
        %v1599 = vlog2.pop %v1576
        %v1600 = vmul.f32 %v1599, 0.6931472
        %v1601 = vlog2.pop %v1577
        %v1602 = vmul.f32 %v1601, 0.6931472
        %v1603 = vlog2.pop %v1578
        %v1604 = vmul.f32 %v1603, 0.6931472
        %v1605 = vlog2.pop %v1579
        %v1606 = vmul.f32 %v1605, 0.6931472
        %v1607 = vlog2.pop %v1580
        %v1608 = vmul.f32 %v1607, 0.6931472
        %v1609 = vlog2.pop %v1581
        %v1610 = vmul.f32 %v1609, 0.6931472
        %v1611 = vlog2.pop %v1582
        %v1612 = vmul.f32 %v1611, 0.6931472
        %v1613 = vlog2.pop %v1583
        %v1614 = vmul.f32 %v1613, 0.6931472
        %v1615 = vlog2.pop %v1584
        %v1616 = vmul.f32 %v1615, 0.6931472
        %v1617 = vld [vmem:[#allocation2] sm:$0xff]
        %v1618 = vld [vmem:[#allocation2 + $0x8] sm:$0xff]
        %v1619 = vld [vmem:[#allocation2 + $0x10] sm:$0xff]
        %v1620 = vld [vmem:[#allocation2 + $0x18] sm:$0xff]
        %v1621 = vld [vmem:[#allocation2 + $0x20] sm:$0xff]
        %v1622 = vld [vmem:[#allocation2 + $0x28] sm:$0xff]
        %v1623 = vld [vmem:[#allocation2 + $0x30] sm:$0xff]
        %v1624 = vld [vmem:[#allocation2 + $0x38] sm:$0xff]
        %v1625 = vld [vmem:[#allocation2 + $0x40] sm:$0xff]
        %v1626 = vld [vmem:[#allocation2 + $0x48] sm:$0xff]
        %v1627 = vld [vmem:[#allocation2 + $0x50] sm:$0xff]
        %v1628 = vld [vmem:[#allocation2 + $0x58] sm:$0xff]
        %v1629 = vld [vmem:[#allocation2 + $0x60] sm:$0xff]
        %v1630 = vld [vmem:[#allocation2 + $0x68] sm:$0xff]
        %v1631 = vld [vmem:[#allocation2 + $0x70] sm:$0xff]
        %v1632 = vld [vmem:[#allocation2 + $0x78] sm:$0xff]
        %v1633 = vadd.f32 %v1586, %v1617
        %v1634 = vadd.f32 %v1588, %v1618
        %v1635 = vadd.f32 %v1590, %v1619
        %v1636 = vadd.f32 %v1592, %v1620
        %v1637 = vadd.f32 %v1594, %v1621
        %v1638 = vadd.f32 %v1596, %v1622
        %v1639 = vadd.f32 %v1598, %v1623
        %v1640 = vadd.f32 %v1600, %v1624
        %v1641 = vadd.f32 %v1602, %v1625
        %v1642 = vadd.f32 %v1604, %v1626
        %v1643 = vadd.f32 %v1606, %v1627
        %v1644 = vadd.f32 %v1608, %v1628
        %v1645 = vadd.f32 %v1610, %v1629
        %v1646 = vadd.f32 %v1612, %v1630
        %v1647 = vadd.f32 %v1614, %v1631
        %v1648 = vadd.f32 %v1616, %v1632
        %v1649 = vld [vmem:[#allocation5] sm:$0xff]
        %v1650 = vld [vmem:[#allocation5 + $0x8] sm:$0xff]
        %v1651 = vld [vmem:[#allocation5 + $0x10] sm:$0xff]
        %v1652 = vld [vmem:[#allocation5 + $0x18] sm:$0xff]
        %v1653 = vld [vmem:[#allocation5 + $0x20] sm:$0xff]
        %v1654 = vld [vmem:[#allocation5 + $0x28] sm:$0xff]
        %v1655 = vld [vmem:[#allocation5 + $0x30] sm:$0xff]
        %v1656 = vld [vmem:[#allocation5 + $0x38] sm:$0xff]
        %v1657 = vld [vmem:[#allocation5 + $0x40] sm:$0xff]
        %v1658 = vld [vmem:[#allocation5 + $0x48] sm:$0xff]
        %v1659 = vld [vmem:[#allocation5 + $0x50] sm:$0xff]
        %v1660 = vld [vmem:[#allocation5 + $0x58] sm:$0xff]
        %v1661 = vld [vmem:[#allocation5 + $0x60] sm:$0xff]
        %v1662 = vld [vmem:[#allocation5 + $0x68] sm:$0xff]
        %v1663 = vld [vmem:[#allocation5 + $0x70] sm:$0xff]
        %v1664 = vld [vmem:[#allocation5 + $0x78] sm:$0xff]
        %v1665 = vld [vmem:[#allocation4] sm:$0xff]
        %v1666 = vld [vmem:[#allocation4 + $0x8] sm:$0xff]
        %v1667 = vld [vmem:[#allocation4 + $0x10] sm:$0xff]
        %v1668 = vld [vmem:[#allocation4 + $0x18] sm:$0xff]
        %v1669 = vld [vmem:[#allocation4 + $0x20] sm:$0xff]
        %v1670 = vld [vmem:[#allocation4 + $0x28] sm:$0xff]
        %v1671 = vld [vmem:[#allocation4 + $0x30] sm:$0xff]
        %v1672 = vld [vmem:[#allocation4 + $0x38] sm:$0xff]
        %v1673 = vld [vmem:[#allocation4 + $0x40] sm:$0xff]
        %v1674 = vld [vmem:[#allocation4 + $0x48] sm:$0xff]
        %v1675 = vld [vmem:[#allocation4 + $0x50] sm:$0xff]
        %v1676 = vld [vmem:[#allocation4 + $0x58] sm:$0xff]
        %v1677 = vld [vmem:[#allocation4 + $0x60] sm:$0xff]
        %v1678 = vld [vmem:[#allocation4 + $0x68] sm:$0xff]
        %v1679 = vld [vmem:[#allocation4 + $0x70] sm:$0xff]
        %v1680 = vld [vmem:[#allocation4 + $0x78] sm:$0xff]
        %v1681 = vmul.f32 %v1649, %v1633
        %v1682 = vmul.f32 %v1650, %v1634
        %v1683 = vmul.f32 %v1651, %v1635
        %v1684 = vmul.f32 %v1652, %v1636
        %v1685 = vmul.f32 %v1653, %v1637
        %v1686 = vmul.f32 %v1654, %v1638
        %v1687 = vmul.f32 %v1655, %v1639
        %v1688 = vmul.f32 %v1656, %v1640
        %v1689 = vmul.f32 %v1657, %v1641
        %v1690 = vmul.f32 %v1658, %v1642
        %v1691 = vmul.f32 %v1659, %v1643
        %v1692 = vmul.f32 %v1660, %v1644
        %v1693 = vmul.f32 %v1661, %v1645
        %v1694 = vmul.f32 %v1662, %v1646
        %v1695 = vmul.f32 %v1663, %v1647
        %v1696 = vmul.f32 %v1664, %v1648
        %v1697 = vsub.f32 %v1665, %v1681
        %v1698 = vsub.f32 %v1666, %v1682
        %v1699 = vsub.f32 %v1667, %v1683
        %v1700 = vsub.f32 %v1668, %v1684
        %v1701 = vsub.f32 %v1669, %v1685
        %v1702 = vsub.f32 %v1670, %v1686
        %v1703 = vsub.f32 %v1671, %v1687
        %v1704 = vsub.f32 %v1672, %v1688
        %v1705 = vsub.f32 %v1673, %v1689
        %v1706 = vsub.f32 %v1674, %v1690
        %v1707 = vsub.f32 %v1675, %v1691
        %v1708 = vsub.f32 %v1676, %v1692
        %v1709 = vsub.f32 %v1677, %v1693
        %v1710 = vsub.f32 %v1678, %v1694
        %v1711 = vsub.f32 %v1679, %v1695
        %v1712 = vsub.f32 %v1680, %v1696
        %v1713 = vmax.f32 %v1649, 1.0
        %v1714 = vmax.f32 %v1650, 1.0
        %v1715 = vmax.f32 %v1651, 1.0
        %v1716 = vmax.f32 %v1652, 1.0
        %v1717 = vmax.f32 %v1653, 1.0
        %v1718 = vmax.f32 %v1654, 1.0
        %v1719 = vmax.f32 %v1655, 1.0
        %v1720 = vmax.f32 %v1656, 1.0
        %v1721 = vmax.f32 %v1657, 1.0
        %v1722 = vmax.f32 %v1658, 1.0
        %v1723 = vmax.f32 %v1659, 1.0
        %v1724 = vmax.f32 %v1660, 1.0
        %v1725 = vmax.f32 %v1661, 1.0
        %v1726 = vmax.f32 %v1662, 1.0
        %v1727 = vmax.f32 %v1663, 1.0
        %v1728 = vmax.f32 %v1664, 1.0
        %v1729 = vrcp.pop %v1713
        %v1730 = vmul.f32 %v1697, %v1729
        %v1731 = vrcp.pop %v1714
        %v1732 = vmul.f32 %v1698, %v1731
        %v1733 = vrcp.pop %v1715
        %v1734 = vmul.f32 %v1699, %v1733
        %v1735 = vrcp.pop %v1716
        %v1736 = vmul.f32 %v1700, %v1735
        %v1737 = vrcp.pop %v1717
        %v1738 = vmul.f32 %v1701, %v1737
        %v1739 = vrcp.pop %v1718
        %v1740 = vmul.f32 %v1702, %v1739
        %v1741 = vrcp.pop %v1719
        %v1742 = vmul.f32 %v1703, %v1741
        %v1743 = vrcp.pop %v1720
        %v1744 = vmul.f32 %v1704, %v1743
        %v1745 = vrcp.pop %v1721
        %v1746 = vmul.f32 %v1705, %v1745
        %v1747 = vrcp.pop %v1722
        %v1748 = vmul.f32 %v1706, %v1747
        %v1749 = vrcp.pop %v1723
        %v1750 = vmul.f32 %v1707, %v1749
        %v1751 = vrcp.pop %v1724
        %v1752 = vmul.f32 %v1708, %v1751
        %v1753 = vrcp.pop %v1725
        %v1754 = vmul.f32 %v1709, %v1753
        %v1755 = vrcp.pop %v1726
        %v1756 = vmul.f32 %v1710, %v1755
        %v1757 = vrcp.pop %v1727
        %v1758 = vmul.f32 %v1711, %v1757
        %v1759 = vrcp.pop %v1728
        %v1760 = vmul.f32 %v1712, %v1759
        %v1761 = vmul.f32 %v1730, -1.0
        %v1762 = vmul.f32 %v1732, -1.0
        %v1763 = vmul.f32 %v1734, -1.0
        %v1764 = vmul.f32 %v1736, -1.0
        %v1765 = vmul.f32 %v1738, -1.0
        %v1766 = vmul.f32 %v1740, -1.0
        %v1767 = vmul.f32 %v1742, -1.0
        %v1768 = vmul.f32 %v1744, -1.0
        %v1769 = vmul.f32 %v1746, -1.0
        %v1770 = vmul.f32 %v1748, -1.0
        %v1771 = vmul.f32 %v1750, -1.0
        %v1772 = vmul.f32 %v1752, -1.0
        %v1773 = vmul.f32 %v1754, -1.0
        %v1774 = vmul.f32 %v1756, -1.0
        %v1775 = vmul.f32 %v1758, -1.0
        %v1776 = vmul.f32 %v1760, -1.0
        %v1777 = vld [vmem:[%s440] sm:$0xff]
        %v1778 = vld [vmem:[%s440 + $0x8] sm:$0xff]
        %v1779 = vld [vmem:[%s440 + $0x10] sm:$0xff]
        %v1780 = vld [vmem:[%s440 + $0x18] sm:$0xff]
        %v1781 = vld [vmem:[%s440 + $0x20] sm:$0xff]
        %v1782 = vld [vmem:[%s440 + $0x28] sm:$0xff]
        %v1783 = vld [vmem:[%s440 + $0x30] sm:$0xff]
        %v1784 = vld [vmem:[%s440 + $0x38] sm:$0xff]
        %v1785 = vld [vmem:[%s440 + $0x40] sm:$0xff]
        %v1786 = vld [vmem:[%s440 + $0x48] sm:$0xff]
        %v1787 = vld [vmem:[%s440 + $0x50] sm:$0xff]
        %v1788 = vld [vmem:[%s440 + $0x58] sm:$0xff]
        %v1789 = vld [vmem:[%s440 + $0x60] sm:$0xff]
        %v1790 = vld [vmem:[%s440 + $0x68] sm:$0xff]
        %v1791 = vld [vmem:[%s440 + $0x70] sm:$0xff]
        %v1792 = vld [vmem:[%s440 + $0x78] sm:$0xff]
        %v1793 = vmul.f32 %v1761, %v1777
        %v1794 = vmul.f32 %v1762, %v1778
        %v1795 = vmul.f32 %v1763, %v1779
        %v1796 = vmul.f32 %v1764, %v1780
        %v1797 = vmul.f32 %v1765, %v1781
        %v1798 = vmul.f32 %v1766, %v1782
        %v1799 = vmul.f32 %v1767, %v1783
        %v1800 = vmul.f32 %v1768, %v1784
        %v1801 = vmul.f32 %v1769, %v1785
        %v1802 = vmul.f32 %v1770, %v1786
        %v1803 = vmul.f32 %v1771, %v1787
        %v1804 = vmul.f32 %v1772, %v1788
        %v1805 = vmul.f32 %v1773, %v1789
        %v1806 = vmul.f32 %v1774, %v1790
        %v1807 = vmul.f32 %v1775, %v1791
        %v1808 = vmul.f32 %v1776, %v1792
        %1809 = vst.msk [vmem:[%s449] sm:$0xff] %vm1308, %v1793
        %1810 = vst.msk [vmem:[%s449 + $0x8] sm:$0xff] %vm1308, %v1794
        %1811 = vst.msk [vmem:[%s449 + $0x10] sm:$0xff] %vm1308, %v1795
        %1812 = vst.msk [vmem:[%s449 + $0x18] sm:$0xff] %vm1308, %v1796
        %1813 = vst.msk [vmem:[%s449 + $0x20] sm:$0xff] %vm1308, %v1797
        %1814 = vst.msk [vmem:[%s449 + $0x28] sm:$0xff] %vm1308, %v1798
        %1815 = vst.msk [vmem:[%s449 + $0x30] sm:$0xff] %vm1308, %v1799
        %1816 = vst.msk [vmem:[%s449 + $0x38] sm:$0xff] %vm1308, %v1800
        %1817 = vst.msk [vmem:[%s449 + $0x40] sm:$0xff] %vm1308, %v1801
        %1818 = vst.msk [vmem:[%s449 + $0x48] sm:$0xff] %vm1308, %v1802
        %1819 = vst.msk [vmem:[%s449 + $0x50] sm:$0xff] %vm1308, %v1803
        %1820 = vst.msk [vmem:[%s449 + $0x58] sm:$0xff] %vm1308, %v1804
        %1821 = vst.msk [vmem:[%s449 + $0x60] sm:$0xff] %vm1308, %v1805
        %1822 = vst.msk [vmem:[%s449 + $0x68] sm:$0xff] %vm1308, %v1806
        %1823 = vst.msk [vmem:[%s449 + $0x70] sm:$0xff] %vm1308, %v1807
        %1824 = vst.msk [vmem:[%s449 + $0x78] sm:$0xff] %vm1308, %v1808
      $region60: #{joint2joint_loss.1} parent=51 // pred_fallthru
        _
      %s1825 = smul.u32 16, %s23
      %p1826 = scmp.lt.s32.totalorder %s1825, 31
      %s1827 = scalar_select %p1826, %s1825, 31
      %s1828 = smul.addr %s1827, 8
      %s1829 = scalar_lea.vmem %s8, %s1828
      // Predicated region
      $region61: #{joint2joint_loss.1} parent=51 // pred_check
        %p1830 = pneg %p257
      $region62: #{joint2joint_loss.1} parent=51 // pred_check_branch
        %1832 = sbr.rel (%p1830) target = $region64
      $region63: #{joint2joint_loss.1} parent=51 // pred_region
        %s1833 = smul.u32 16, %s23
      $region64: #{joint2joint_loss.1} parent=51 // pred_fallthru
        _
    $region52: #{joint2joint_loss.1} parent=5 // pred_fallthru
      _
    %p1834 = scmp.le.s32.totalorder 2, %s14
    // Predicated region
    $region65: #{joint2joint_loss.1} parent=5 // pred_check
      %p1835 = pneg %p1834
    $region66: #{joint2joint_loss.1} parent=5 // pred_check_branch
      %1837 = sbr.rel (%p1835) target = $region68
    $region67: #{joint2joint_loss.1} parent=5 // pred_region
      %s1838 = ssub.s32 %s14, 2
      // Predicated region
      $region69: #{joint2joint_loss.1} parent=67 // pred_check
        %p1839 = pneg %p263
      $region70: #{joint2joint_loss.1} parent=67 // pred_check_branch
        %1841 = sbr.rel (%p1839) target = $region72
      $region71: #{joint2joint_loss.1} parent=67 // pred_region
        %s1842 = smul.u32 16, %s25
        %p1843 = scmp.lt.s32.totalorder %s1842, 31
        %s1844 = scalar_select %p1843, %s1842, 31
        %s1845 = smul.addr %s1844, 8
        %s1846 = scalar_lea.vmem %s8, %s1845
      $region72: #{joint2joint_loss.1} parent=67 // pred_fallthru
        _
    $region68: #{joint2joint_loss.1} parent=5 // pred_fallthru
      _
  $region6: #{joint2joint_loss.1} parent=0 // loop_footer
    %s18 = sadd.s32 1, %s14
  $region7: #{joint2joint_loss.1} parent=0 // loop_footer_branch
    %13 = sbr.rel target = $region3
  $region8: #{joint2joint_loss.1} parent=0 // loop_exit
    _

</llo_original>
